<compile_context>
chip_gen: v5e
topology: v5e:2x2
jax: 0.10.0
libtpu: 0.0.40
codegen_flags: <defaults>
</compile_context>

<pallas_src>
import functools

import jax
import jax.numpy as jnp
from jax import lax
from jax.experimental import pallas as pl
from jax.experimental.pallas import tpu as pltpu

_LANE = 128


def _sepconv_kernel(x_ref, dw_ref, pw_ref, o_ref, *, ksize, dilation, th, wo):
    # x_ref : (1, 1, TH+halo, Wp, Cin_p)  one row band of one batch element
    # dw_ref: (KH, KW, Cin_p)             depthwise weights (f32, lane = channel)
    # pw_ref: (Cin_p, Cout_p)             pointwise weights (bf16)
    # o_ref : (1, TH, Wo, Cout_p)         output row band (lane-dense Cout_p=128k)
    kh_n, kw_n = ksize
    cin_p = x_ref.shape[-1]
    cout_p = o_ref.shape[-1]

    # Depthwise conv: VPU broadcast-MACs over the KxK taps, channels on lanes.
    # Ref-side static slices -> pure address arithmetic, no 9x tile copies.
    acc = jnp.zeros((th, wo, cin_p), dtype=jnp.float32)
    for kh in range(kh_n):
        for kw in range(kw_n):
            patch = x_ref[0, 0,
                          pl.ds(kh * dilation, th),
                          pl.ds(kw * dilation, wo), :]
            acc = acc + patch.astype(jnp.float32) * dw_ref[kh, kw, :]

    # Pointwise 1x1 conv: channel contraction on the MXU, bf16 in / f32 acc.
    # Reshape merges the leading (TH, Wo) dims and keeps the lane (channel) dim,
    # so it is layout-preserving when Wo % 8 == 0.
    lhs = acc.reshape(th * wo, cin_p).astype(jnp.bfloat16)
    out = jnp.dot(lhs, pw_ref[...], preferred_element_type=jnp.float32)
    o_ref[...] = out.reshape(1, th, wo, cout_p).astype(o_ref.dtype)


def separable_conv2d(x_nchw, dw_weight, pw_weight, *,
                     stride=1, padding=1, dilation=1, row_tile=None):
    """Forward pass of SeparableConv2d (PyTorch NCHW in / NCHW out).

    x_nchw    : (N, Cin, H, W)
    dw_weight : (Cin, 1, KH, KW)   depthwise conv weight (groups = Cin)
    pw_weight : (Cout, Cin, 1, 1)  pointwise conv weight
    """
    assert stride == 1, "TODO(synk): stride > 1 not implemented in the Pallas kernel"
    n, cin, h, w = x_nchw.shape
    kh, kw = int(dw_weight.shape[2]), int(dw_weight.shape[3])
    cout = int(pw_weight.shape[0])

    halo_h = dilation * (kh - 1)
    halo_w = dilation * (kw - 1)
    ho = h + 2 * padding - halo_h
    wo = w + 2 * padding - halo_w

    cin_p = -(-cin // _LANE) * _LANE
    cout_p = -(-cout // _LANE) * _LANE

    # Row-tile height: bounds VMEM per grid step (important on v7x's 64 MiB) and
    # adds a second parallel grid axis.
    if row_tile is None:
        row_tile = min(ho, 64)
    th = max(1, min(int(row_tile), ho))
    n_tiles = -(-ho // th)
    ho_pad = n_tiles * th

    # ---- glue (plain JAX): layout, channel padding, spatial padding, row bands.
    x_nhwc = jnp.transpose(x_nchw, (0, 2, 3, 1))                       # (N,H,W,Cin)
    x_pad = jnp.pad(
        x_nhwc,
        ((0, 0),
         (padding, padding + (ho_pad - ho)),
         (padding, padding),
         (0, cin_p - cin)))
    wp = x_pad.shape[2]
    band_h = th + halo_h
    # Overlapping row bands (each with its halo) -> plain Blocked BlockSpecs.
    bands = jnp.stack(
        [x_pad[:, i * th: i * th + band_h] for i in range(n_tiles)], axis=1)
    # bands: (N, n_tiles, band_h, Wp, Cin_p)

    # Depthwise weights: (Cin,1,KH,KW) -> (KH,KW,Cin_p) f32 (VPU path).
    dw = jnp.transpose(dw_weight[:, 0, :, :], (1, 2, 0)).astype(jnp.float32)
    dw = jnp.pad(dw, ((0, 0), (0, 0), (0, cin_p - cin)))
    # Pointwise weights: (Cout,Cin,1,1) -> (Cin_p,Cout_p) bf16 (MXU path).
    pw = jnp.transpose(pw_weight[:, :, 0, 0], (1, 0))
    pw = jnp.pad(pw, ((0, cin_p - cin), (0, cout_p - cout))).astype(jnp.bfloat16)

    kernel = functools.partial(
        _sepconv_kernel, ksize=(kh, kw), dilation=dilation, th=th, wo=wo)

    # Advisory cost estimate (real, un-padded work).
    flops = 2 * n * ho * wo * cin * (kh * kw + cout)
    bytes_accessed = (bands.size * bands.dtype.itemsize
                      + dw.size * dw.dtype.itemsize
                      + pw.size * pw.dtype.itemsize
                      + n * ho_pad * wo * cout_p * x_nchw.dtype.itemsize)

    # Scoped-VMEM sizing: 2x (double-buffered) input band + output block,
    # resident weights, and the f32 accumulator.
    band_bytes = band_h * wp * cin_p * bands.dtype.itemsize
    out_blk_bytes = th * wo * cout_p * x_nchw.dtype.itemsize
    acc_bytes = th * wo * cin_p * 4
    vmem_need = (2 * (band_bytes + out_blk_bytes)
                 + dw.size * 4 + pw.size * 2 + acc_bytes)
    vmem_limit = int(min(max(2 * vmem_need, 32 * 1024 * 1024), 64 * 1024 * 1024))

    out_nhwc = pl.pallas_call(
        kernel,
        out_shape=jax.ShapeDtypeStruct((n, ho_pad, wo, cout_p), x_nchw.dtype),
        grid_spec=pltpu.PrefetchScalarGridSpec(
            num_scalar_prefetch=0,
            grid=(n, n_tiles),
            in_specs=[
                pl.BlockSpec((1, 1, band_h, wp, cin_p),
                             lambda b, i: (b, i, 0, 0, 0)),
                pl.BlockSpec((kh, kw, cin_p), lambda b, i: (0, 0, 0)),
                pl.BlockSpec((cin_p, cout_p), lambda b, i: (0, 0)),
            ],
            out_specs=pl.BlockSpec((1, th, wo, cout_p),
                                   lambda b, i: (b, i, 0, 0)),
        ),
        compiler_params=pltpu.CompilerParams(
            dimension_semantics=("parallel", "parallel"),
            vmem_limit_bytes=vmem_limit),
        cost_estimate=pl.CostEstimate(
            flops=flops, transcendentals=0, bytes_accessed=bytes_accessed),
    )(bands, dw, pw)

    out_nhwc = out_nhwc[:, :ho, :, :cout]            # crop row padding + channel padding
    return jnp.transpose(out_nhwc, (0, 3, 1, 2))     # back to NCHW


def _reference(x_nchw, dw_weight, pw_weight, *, stride=1, padding=1, dilation=1):
    """Pure-JAX reference (lax conv) matching PyTorch semantics."""
    cin = x_nchw.shape[1]
    y = lax.conv_general_dilated(
        x_nchw, dw_weight,
        window_strides=(stride, stride),
        padding=[(padding, padding), (padding, padding)],
        rhs_dilation=(dilation, dilation),
        dimension_numbers=("NCHW", "OIHW", "NCHW"),
        feature_group_count=cin)
    y = lax.conv_general_dilated(
        y, pw_weight,
        window_strides=(1, 1),
        padding=[(0, 0), (0, 0)],
        dimension_numbers=("NCHW", "OIHW", "NCHW"))
    return y


if __name__ == "__main__":
    key = jax.random.PRNGKey(0)
    k1, k2, k3 = jax.random.split(key, 3)

    # Small shapes: batch=2, in_channels=4, out_channels=8, spatial 16x16, 3x3 depthwise.
    N, Cin, Cout, H, W, K = 2, 4, 8, 16, 16, 3
    x = jax.random.normal(k1, (N, Cin, H, W), dtype=jnp.float32)
    dw_weight = jax.random.normal(k2, (Cin, 1, K, K), dtype=jnp.float32) * 0.1
    pw_weight = jax.random.normal(k3, (Cout, Cin, 1, 1), dtype=jnp.float32) * 0.1

    ref = jax.block_until_ready(
        _reference(x, dw_weight, pw_weight, stride=1, padding=1, dilation=1))

    # Exercise both the single-tile path and an uneven multi-row-tile path.
    for rt in (None, 6):
        out = jax.block_until_ready(
            separable_conv2d(x, dw_weight, pw_weight,
                             stride=1, padding=1, dilation=1, row_tile=rt))
        assert out.shape == (N, Cout, H, W), out.shape
        max_err = float(jnp.max(jnp.abs(out - ref)))
        # bf16 MXU operands with f32 accumulation -> ~1e-3 level error vs f32 ref.
        assert jnp.allclose(out, ref, atol=1e-2, rtol=1e-2), max_err

    print("KERNEL_OK")
</pallas_src>

<mosaic_0001>
module attributes {stable_mosaic.version = 11 : i64} {
  func.func @_sepconv_kernel(%arg0: i32, %arg1: i32, %arg2: memref<1x1x18x18x128xf32, #tpu.memory_space<vmem>>, %arg3: memref<3x3x128xf32, #tpu.memory_space<vmem>>, %arg4: memref<128x128xbf16, #tpu.memory_space<vmem>>, %arg5: memref<1x16x16x128xf32, #tpu.memory_space<vmem>>) attributes {dimension_semantics = [#tpu.dimension_semantics<parallel>, #tpu.dimension_semantics<parallel>], iteration_bounds = array<i64: 2, 1>, scalar_prefetch = 0 : i64, scratch_operands = 0 : i64, tpu.core_type = #tpu.core_type<tc>, window_params = [{transform_indices = @transform_0, window_bounds = array<i64: 1, 1, 18, 18, 128>}, {pipeline_mode = #tpu.pipeline_mode<synchronous>, transform_indices = @transform_1, window_bounds = array<i64: 3, 3, 128>}, {pipeline_mode = #tpu.pipeline_mode<synchronous>, transform_indices = @transform_2, window_bounds = array<i64: 128, 128>}, {transform_indices = @transform_3, window_bounds = array<i64: 1, 16, 16, 128>}]} {
    %cst = arith.constant 0.000000e+00 : f32
    %0 = vector.broadcast %cst : f32 to vector<16x16x128xf32>
    %c0 = arith.constant 0 : index
    %c0_0 = arith.constant 0 : index
    %c0_1 = arith.constant 0 : index
    %c0_2 = arith.constant 0 : index
    %c0_3 = arith.constant 0 : index
    %1 = vector.load %arg2[%c0, %c0_0, %c0_1, %c0_2, %c0_3] : memref<1x1x18x18x128xf32, #tpu.memory_space<vmem>>, vector<1x1x16x16x128xf32>
    %2 = vector.shape_cast %1 : vector<1x1x16x16x128xf32> to vector<16x16x128xf32>
    %c0_4 = arith.constant 0 : index
    %c0_5 = arith.constant 0 : index
    %c0_6 = arith.constant 0 : index
    %3 = vector.load %arg3[%c0_4, %c0_5, %c0_6] : memref<3x3x128xf32, #tpu.memory_space<vmem>>, vector<1x1x128xf32>
    %4 = vector.shape_cast %3 : vector<1x1x128xf32> to vector<128xf32>
    %5 = vector.shape_cast %4 : vector<128xf32> to vector<1x1x128xf32>
    %6 = vector.broadcast %5 : vector<1x1x128xf32> to vector<16x16x128xf32>
    %7 = arith.mulf %2, %6 : vector<16x16x128xf32>
    %8 = arith.addf %0, %7 : vector<16x16x128xf32>
    %c0_7 = arith.constant 0 : index
    %c0_8 = arith.constant 0 : index
    %c0_9 = arith.constant 0 : index
    %c1 = arith.constant 1 : index
    %c0_10 = arith.constant 0 : index
    %9 = vector.load %arg2[%c0_7, %c0_8, %c0_9, %c1, %c0_10] : memref<1x1x18x18x128xf32, #tpu.memory_space<vmem>>, vector<1x1x16x16x128xf32>
    %10 = vector.shape_cast %9 : vector<1x1x16x16x128xf32> to vector<16x16x128xf32>
    %c0_11 = arith.constant 0 : index
    %c1_12 = arith.constant 1 : index
    %c0_13 = arith.constant 0 : index
    %11 = vector.load %arg3[%c0_11, %c1_12, %c0_13] : memref<3x3x128xf32, #tpu.memory_space<vmem>>, vector<1x1x128xf32>
    %12 = vector.shape_cast %11 : vector<1x1x128xf32> to vector<128xf32>
    %13 = vector.shape_cast %12 : vector<128xf32> to vector<1x1x128xf32>
    %14 = vector.broadcast %13 : vector<1x1x128xf32> to vector<16x16x128xf32>
    %15 = arith.mulf %10, %14 : vector<16x16x128xf32>
    %16 = arith.addf %8, %15 : vector<16x16x128xf32>
    %c0_14 = arith.constant 0 : index
    %c0_15 = arith.constant 0 : index
    %c0_16 = arith.constant 0 : index
    %c2 = arith.constant 2 : index
    %c0_17 = arith.constant 0 : index
    %17 = vector.load %arg2[%c0_14, %c0_15, %c0_16, %c2, %c0_17] : memref<1x1x18x18x128xf32, #tpu.memory_space<vmem>>, vector<1x1x16x16x128xf32>
    %18 = vector.shape_cast %17 : vector<1x1x16x16x128xf32> to vector<16x16x128xf32>
    %c0_18 = arith.constant 0 : index
    %c2_19 = arith.constant 2 : index
    %c0_20 = arith.constant 0 : index
    %19 = vector.load %arg3[%c0_18, %c2_19, %c0_20] : memref<3x3x128xf32, #tpu.memory_space<vmem>>, vector<1x1x128xf32>
    %20 = vector.shape_cast %19 : vector<1x1x128xf32> to vector<128xf32>
    %21 = vector.shape_cast %20 : vector<128xf32> to vector<1x1x128xf32>
    %22 = vector.broadcast %21 : vector<1x1x128xf32> to vector<16x16x128xf32>
    %23 = arith.mulf %18, %22 : vector<16x16x128xf32>
    %24 = arith.addf %16, %23 : vector<16x16x128xf32>
    %c0_21 = arith.constant 0 : index
    %c0_22 = arith.constant 0 : index
    %c1_23 = arith.constant 1 : index
    %c0_24 = arith.constant 0 : index
    %c0_25 = arith.constant 0 : index
    %25 = vector.load %arg2[%c0_21, %c0_22, %c1_23, %c0_24, %c0_25] : memref<1x1x18x18x128xf32, #tpu.memory_space<vmem>>, vector<1x1x16x16x128xf32>
    %26 = vector.shape_cast %25 : vector<1x1x16x16x128xf32> to vector<16x16x128xf32>
    %c1_26 = arith.constant 1 : index
    %c0_27 = arith.constant 0 : index
    %c0_28 = arith.constant 0 : index
    %27 = vector.load %arg3[%c1_26, %c0_27, %c0_28] : memref<3x3x128xf32, #tpu.memory_space<vmem>>, vector<1x1x128xf32>
    %28 = vector.shape_cast %27 : vector<1x1x128xf32> to vector<128xf32>
    %29 = vector.shape_cast %28 : vector<128xf32> to vector<1x1x128xf32>
    %30 = vector.broadcast %29 : vector<1x1x128xf32> to vector<16x16x128xf32>
    %31 = arith.mulf %26, %30 : vector<16x16x128xf32>
    %32 = arith.addf %24, %31 : vector<16x16x128xf32>
    %c0_29 = arith.constant 0 : index
    %c0_30 = arith.constant 0 : index
    %c1_31 = arith.constant 1 : index
    %c1_32 = arith.constant 1 : index
    %c0_33 = arith.constant 0 : index
    %33 = vector.load %arg2[%c0_29, %c0_30, %c1_31, %c1_32, %c0_33] : memref<1x1x18x18x128xf32, #tpu.memory_space<vmem>>, vector<1x1x16x16x128xf32>
    %34 = vector.shape_cast %33 : vector<1x1x16x16x128xf32> to vector<16x16x128xf32>
    %c1_34 = arith.constant 1 : index
    %c1_35 = arith.constant 1 : index
    %c0_36 = arith.constant 0 : index
    %35 = vector.load %arg3[%c1_34, %c1_35, %c0_36] : memref<3x3x128xf32, #tpu.memory_space<vmem>>, vector<1x1x128xf32>
    %36 = vector.shape_cast %35 : vector<1x1x128xf32> to vector<128xf32>
    %37 = vector.shape_cast %36 : vector<128xf32> to vector<1x1x128xf32>
    %38 = vector.broadcast %37 : vector<1x1x128xf32> to vector<16x16x128xf32>
    %39 = arith.mulf %34, %38 : vector<16x16x128xf32>
    %40 = arith.addf %32, %39 : vector<16x16x128xf32>
    %c0_37 = arith.constant 0 : index
    %c0_38 = arith.constant 0 : index
    %c1_39 = arith.constant 1 : index
    %c2_40 = arith.constant 2 : index
    %c0_41 = arith.constant 0 : index
    %41 = vector.load %arg2[%c0_37, %c0_38, %c1_39, %c2_40, %c0_41] : memref<1x1x18x18x128xf32, #tpu.memory_space<vmem>>, vector<1x1x16x16x128xf32>
    %42 = vector.shape_cast %41 : vector<1x1x16x16x128xf32> to vector<16x16x128xf32>
    %c1_42 = arith.constant 1 : index
    %c2_43 = arith.constant 2 : index
    %c0_44 = arith.constant 0 : index
    %43 = vector.load %arg3[%c1_42, %c2_43, %c0_44] : memref<3x3x128xf32, #tpu.memory_space<vmem>>, vector<1x1x128xf32>
    %44 = vector.shape_cast %43 : vector<1x1x128xf32> to vector<128xf32>
    %45 = vector.shape_cast %44 : vector<128xf32> to vector<1x1x128xf32>
    %46 = vector.broadcast %45 : vector<1x1x128xf32> to vector<16x16x128xf32>
    %47 = arith.mulf %42, %46 : vector<16x16x128xf32>
    %48 = arith.addf %40, %47 : vector<16x16x128xf32>
    %c0_45 = arith.constant 0 : index
    %c0_46 = arith.constant 0 : index
    %c2_47 = arith.constant 2 : index
    %c0_48 = arith.constant 0 : index
    %c0_49 = arith.constant 0 : index
    %49 = vector.load %arg2[%c0_45, %c0_46, %c2_47, %c0_48, %c0_49] : memref<1x1x18x18x128xf32, #tpu.memory_space<vmem>>, vector<1x1x16x16x128xf32>
    %50 = vector.shape_cast %49 : vector<1x1x16x16x128xf32> to vector<16x16x128xf32>
    %c2_50 = arith.constant 2 : index
    %c0_51 = arith.constant 0 : index
    %c0_52 = arith.constant 0 : index
    %51 = vector.load %arg3[%c2_50, %c0_51, %c0_52] : memref<3x3x128xf32, #tpu.memory_space<vmem>>, vector<1x1x128xf32>
    %52 = vector.shape_cast %51 : vector<1x1x128xf32> to vector<128xf32>
    %53 = vector.shape_cast %52 : vector<128xf32> to vector<1x1x128xf32>
    %54 = vector.broadcast %53 : vector<1x1x128xf32> to vector<16x16x128xf32>
    %55 = arith.mulf %50, %54 : vector<16x16x128xf32>
    %56 = arith.addf %48, %55 : vector<16x16x128xf32>
    %c0_53 = arith.constant 0 : index
    %c0_54 = arith.constant 0 : index
    %c2_55 = arith.constant 2 : index
    %c1_56 = arith.constant 1 : index
    %c0_57 = arith.constant 0 : index
    %57 = vector.load %arg2[%c0_53, %c0_54, %c2_55, %c1_56, %c0_57] : memref<1x1x18x18x128xf32, #tpu.memory_space<vmem>>, vector<1x1x16x16x128xf32>
    %58 = vector.shape_cast %57 : vector<1x1x16x16x128xf32> to vector<16x16x128xf32>
    %c2_58 = arith.constant 2 : index
    %c1_59 = arith.constant 1 : index
    %c0_60 = arith.constant 0 : index
    %59 = vector.load %arg3[%c2_58, %c1_59, %c0_60] : memref<3x3x128xf32, #tpu.memory_space<vmem>>, vector<1x1x128xf32>
    %60 = vector.shape_cast %59 : vector<1x1x128xf32> to vector<128xf32>
    %61 = vector.shape_cast %60 : vector<128xf32> to vector<1x1x128xf32>
    %62 = vector.broadcast %61 : vector<1x1x128xf32> to vector<16x16x128xf32>
    %63 = arith.mulf %58, %62 : vector<16x16x128xf32>
    %64 = arith.addf %56, %63 : vector<16x16x128xf32>
    %c0_61 = arith.constant 0 : index
    %c0_62 = arith.constant 0 : index
    %c2_63 = arith.constant 2 : index
    %c2_64 = arith.constant 2 : index
    %c0_65 = arith.constant 0 : index
    %65 = vector.load %arg2[%c0_61, %c0_62, %c2_63, %c2_64, %c0_65] : memref<1x1x18x18x128xf32, #tpu.memory_space<vmem>>, vector<1x1x16x16x128xf32>
    %66 = vector.shape_cast %65 : vector<1x1x16x16x128xf32> to vector<16x16x128xf32>
    %c2_66 = arith.constant 2 : index
    %c2_67 = arith.constant 2 : index
    %c0_68 = arith.constant 0 : index
    %67 = vector.load %arg3[%c2_66, %c2_67, %c0_68] : memref<3x3x128xf32, #tpu.memory_space<vmem>>, vector<1x1x128xf32>
    %68 = vector.shape_cast %67 : vector<1x1x128xf32> to vector<128xf32>
    %69 = vector.shape_cast %68 : vector<128xf32> to vector<1x1x128xf32>
    %70 = vector.broadcast %69 : vector<1x1x128xf32> to vector<16x16x128xf32>
    %71 = arith.mulf %66, %70 : vector<16x16x128xf32>
    %72 = arith.addf %64, %71 : vector<16x16x128xf32>
    %73 = vector.shape_cast %72 : vector<16x16x128xf32> to vector<256x128xf32>
    %74 = arith.truncf %73 : vector<256x128xf32> to vector<256x128xbf16>
    %c0_69 = arith.constant 0 : index
    %c0_70 = arith.constant 0 : index
    %75 = vector.load %arg4[%c0_69, %c0_70] : memref<128x128xbf16, #tpu.memory_space<vmem>>, vector<128x128xbf16>
    %cst_71 = arith.constant dense<0.000000e+00> : vector<256x128xf32>
    %76 = tpu.matmul %74, %75, %cst_71 {dimension_numbers = #tpu.dot_dimension_numbers<[1], [0], [0], [1], [0, 0, 1, 1], [], []>} : vector<256x128xbf16>, vector<128x128xbf16>, vector<256x128xf32> -> vector<256x128xf32>
    %77 = vector.shape_cast %76 : vector<256x128xf32> to vector<1x16x16x128xf32>
    %c0_72 = arith.constant 0 : index
    %c0_73 = arith.constant 0 : index
    %c0_74 = arith.constant 0 : index
    %c0_75 = arith.constant 0 : index
    %78 = vector.load %arg5[%c0_72, %c0_73, %c0_74, %c0_75] : memref<1x16x16x128xf32, #tpu.memory_space<vmem>>, vector<1x16x16x128xf32>
    tpu.vector_store %arg5[%c0_72, %c0_73, %c0_74, %c0_75], %77 {strides = array<i32>} : memref<1x16x16x128xf32, #tpu.memory_space<vmem>>, vector<1x16x16x128xf32>,
    return
  }
  func.func @transform_0(%arg0: i32, %arg1: i32) -> (i32, i32, i32, i32, i32) {
    %c0_i32 = arith.constant 0 : i32
    %c0_i32_0 = arith.constant 0 : i32
    %c0_i32_1 = arith.constant 0 : i32
    %c0_i32_2 = arith.constant 0 : i32
    return %arg0, %arg1, %c0_i32, %c0_i32_0, %c0_i32_1 : i32, i32, i32, i32, i32
  }
  func.func @transform_1(%arg0: i32, %arg1: i32) -> (i32, i32, i32) {
    %c0_i32 = arith.constant 0 : i32
    %c0_i32_0 = arith.constant 0 : i32
    %c0_i32_1 = arith.constant 0 : i32
    %c0_i32_2 = arith.constant 0 : i32
    return %c0_i32, %c0_i32_0, %c0_i32_1 : i32, i32, i32
  }
  func.func @transform_2(%arg0: i32, %arg1: i32) -> (i32, i32) {
    %c0_i32 = arith.constant 0 : i32
    %c0_i32_0 = arith.constant 0 : i32
    %c0_i32_1 = arith.constant 0 : i32
    return %c0_i32, %c0_i32_0 : i32, i32
  }
  func.func @transform_3(%arg0: i32, %arg1: i32) -> (i32, i32, i32, i32) {
    %c0_i32 = arith.constant 0 : i32
    %c0_i32_0 = arith.constant 0 : i32
    %c0_i32_1 = arith.constant 0 : i32
    return %arg0, %arg1, %c0_i32, %c0_i32_0 : i32, i32, i32, i32
  }
}

</mosaic_0001>

<llo_original>
// kernel: tpu_custom_call.1
$region0: #{tpu_custom_call.1}
  #allocation0 [shape = 'u32[]', space=smem, size = 0x4, offset = 0x4, fixed_abs, tag = 'smem constant byte address 0x4 - core index']
  #allocation1 [shape = 'u32[72,128]{1,0:T(1,128)}', space=vmem, size = 0x9000, scoped, tag = 'internal scratch']
  %s0 = inlined_call_operand.vmem [shape: f32[2,1,18,18,128], index: 0, kind: input, shape index: {}]
  %s1 = inlined_call_operand.vmem [shape: f32[3,3,128], index: 1, kind: input, shape index: {}]
  %s2 = inlined_call_operand.vmem [shape: bf16[128,128], index: 2, kind: input, shape index: {}]
  %s3 = inlined_call_operand.hbm [shape: f32[2,16,16,128], index: 3, kind: output, shape index: {}]
  %s4 = sld [smem:[#allocation0]]
  $region45: #{tpu_custom_call.1} parent=0
    _
  %s6 = ssub.s32 1, %s4
  %s7 = scalar_select 0, %s6, %s4
  $region1: #{tpu_custom_call.1} parent=0
    #allocation2 [shape = 'u8[262144]{0}', space=vmem, size = 0x40000, scoped, tag = 'output window, operand 0']
    #allocation3 [shape = 's32[2]{0}', space=sflag, size = 0x8, scoped, tag = 'scoped memory for tpu_custom_call.1']
    %8 = vsyncpa [#allocation3], 0
    %s9 = scalar_lea.sflag [#allocation3], 1
    %10 = vsyncpa %s9, 0
    loop: start=0, step=1, limit=4
    $region2: #{tpu_custom_call.1} parent=1 // loop_pre_header
      _
    $region3: #{tpu_custom_call.1} parent=1 // loop_header
      %s12 = sphi 0, %s16
      %p13 = scmp.ge.s32.totalorder %s12, 4
      %s19 = sphi 0, %s31
      %s20 = sphi 0, %s27
      %s21 = sphi 0, %s19
      %s22 = sphi 0, %s20
      %s23 = sphi 0, %s21
      %s24 = sphi 0, %s22
      %s36 = sphi 0, %s38
      %s39 = sphi 0, %s36
      %s40 = sphi 0, %s39
      %s56 = sphi 0, %s40
      %s60 = sphi 0, %s60
      %s62 = sphi 0, %s60
      %s63 = sphi 0, %s62
      %s77 = sphi 0, %s63
      %s81 = sphi 0, %s81
      %s83 = sphi 0, %s81
      %s84 = sphi 0, %s83
      %s98 = sphi 0, %s84
      %s106 = sphi 0, %s108
      %s109 = sphi 0, %s106
      %s110 = sphi 0, %s109
      %s126 = sphi 0, %s110
    $region4: #{tpu_custom_call.1} parent=1 // loop_header_branch
      %15 = sbr.rel (%p13) target = $region8
    $region5: #{tpu_custom_call.1} parent=1 // loop_body
      %s17 = ssub.s32 %s12, 1
      %s18 = ssub.s32 %s12, 2
      %s25 = sadd.s32 1, %s20
      %p26 = scmp.ge.s32.totalorder %s25, 1
      %s27 = scalar_select %p26, 0, %s25
      %s28 = sadd.s32 1, %s19
      %s29 = scalar_select %p26, %s28, %s19
      %p30 = scmp.ge.s32.totalorder %s29, 2
      %s31 = scalar_select %p30, 0, %s29
      %s32 = ssub.s32 %s19, %s31
      %s33 = ssub.s32 %s20, %s27
      %s34 = sor.u32 %s32, %s33
      %p35 = scmp.eq.s32.totalorder %s34, 0
      %s37 = sadd.s32 %s36, 1
      %s38 = scalar_select %p35, %s36, %s37
      %p41 = pneg %p35
      %p42 = scmp.eq.s32.totalorder %s12, 1
      %p43 = por %p41, %p42
      %p44 = scmp.ne.s32.totalorder %s36, %s39
      %p45 = scmp.eq.s32.totalorder %s12, 0
      %p46 = por %p44, %p45
      %p47 = scmp.ne.s32.totalorder %s36, %s39
      %p48 = scmp.eq.s32.totalorder %s17, 1
      %p49 = por %p47, %p48
      %p50 = scmp.ne.s32.totalorder %s39, %s40
      %p51 = scmp.eq.s32.totalorder %s17, 0
      %p52 = por %p50, %p51
      %p53 = scmp.ne.s32.totalorder %s39, %s40
      %p54 = scmp.eq.s32.totalorder %s18, 1
      %p55 = por %p53, %p54
      %p57 = scmp.ne.s32.totalorder %s40, %s56
      %p58 = scmp.eq.s32.totalorder %s18, 0
      %p59 = por %p57, %p58
      %s61 = sadd.s32 %s60, 1
      %p64 = scmp.eq.s32.totalorder %s12, 1
      %p65 = scmp.ne.s32.totalorder %s60, %s62
      %p66 = scmp.eq.s32.totalorder %s12, 0
      %p67 = por %p65, %p66
      %p68 = scmp.ne.s32.totalorder %s60, %s62
      %p69 = scmp.eq.s32.totalorder %s17, 1
      %p70 = por %p68, %p69
      %p71 = scmp.ne.s32.totalorder %s62, %s63
      %p72 = scmp.eq.s32.totalorder %s17, 0
      %p73 = por %p71, %p72
      %p74 = scmp.ne.s32.totalorder %s62, %s63
      %p75 = scmp.eq.s32.totalorder %s18, 1
      %p76 = por %p74, %p75
      %p78 = scmp.ne.s32.totalorder %s63, %s77
      %p79 = scmp.eq.s32.totalorder %s18, 0
      %p80 = por %p78, %p79
      %s82 = sadd.s32 %s81, 1
      %p85 = scmp.eq.s32.totalorder %s12, 1
      %p86 = scmp.ne.s32.totalorder %s81, %s83
      %p87 = scmp.eq.s32.totalorder %s12, 0
      %p88 = por %p86, %p87
      %p89 = scmp.ne.s32.totalorder %s81, %s83
      %p90 = scmp.eq.s32.totalorder %s17, 1
      %p91 = por %p89, %p90
      %p92 = scmp.ne.s32.totalorder %s83, %s84
      %p93 = scmp.eq.s32.totalorder %s17, 0
      %p94 = por %p92, %p93
      %p95 = scmp.ne.s32.totalorder %s83, %s84
      %p96 = scmp.eq.s32.totalorder %s18, 1
      %p97 = por %p95, %p96
      %p99 = scmp.ne.s32.totalorder %s84, %s98
      %p100 = scmp.eq.s32.totalorder %s18, 0
      %p101 = por %p99, %p100
      %s102 = ssub.s32 %s19, %s31
      %s103 = ssub.s32 %s20, %s27
      %s104 = sor.u32 %s102, %s103
      %p105 = scmp.eq.s32.totalorder %s104, 0
      %s107 = sadd.s32 %s106, 1
      %s108 = scalar_select %p105, %s106, %s107
      %p111 = pneg %p105
      %p112 = scmp.eq.s32.totalorder %s12, 1
      %p113 = por %p111, %p112
      %p114 = scmp.ne.s32.totalorder %s106, %s109
      %p115 = scmp.eq.s32.totalorder %s12, 0
      %p116 = por %p114, %p115
      %p117 = scmp.ne.s32.totalorder %s106, %s109
      %p118 = scmp.eq.s32.totalorder %s17, 1
      %p119 = por %p117, %p118
      %p120 = scmp.ne.s32.totalorder %s109, %s110
      %p121 = scmp.eq.s32.totalorder %s17, 0
      %p122 = por %p120, %p121
      %p123 = scmp.ne.s32.totalorder %s109, %s110
      %p124 = scmp.eq.s32.totalorder %s18, 1
      %p125 = por %p123, %p124
      %p127 = scmp.ne.s32.totalorder %s110, %s126
      %p128 = scmp.eq.s32.totalorder %s18, 0
      %p129 = por %p127, %p128
      %p130 = scmp.le.s32.totalorder 1, %s12
      %p131 = scmp.lt.s32.totalorder %s12, 3
      %p132 = pnand %p130, %p131
      %p133 = pneg %p132
      // Predicated region
      $region9: #{tpu_custom_call.1} parent=5 // pred_check
        _
      $region10: #{tpu_custom_call.1} parent=5 // pred_check_branch
        %135 = sbr.rel (%p132) target = $region12
      $region11: #{tpu_custom_call.1} parent=5 // pred_region
        %s136 = ssub.s32 %s12, 1
        // Predicated region
        $region13: #{tpu_custom_call.1} parent=11 // pred_check
          %p137 = pneg %p73
        $region14: #{tpu_custom_call.1} parent=11 // pred_check_branch
          %139 = sbr.rel (%p137) target = $region16
        $region15: #{tpu_custom_call.1} parent=11 // pred_region
          _
        $region16: #{tpu_custom_call.1} parent=11 // pred_fallthru
          _
        // Predicated region
        $region17: #{tpu_custom_call.1} parent=11 // pred_check
          %p140 = pneg %p94
        $region18: #{tpu_custom_call.1} parent=11 // pred_check_branch
          %142 = sbr.rel (%p140) target = $region20
        $region19: #{tpu_custom_call.1} parent=11 // pred_region
          _
        $region20: #{tpu_custom_call.1} parent=11 // pred_fallthru
          _
      $region12: #{tpu_custom_call.1} parent=5 // pred_fallthru
        _
      %p143 = scmp.lt.s32.totalorder %s12, 2
      // Predicated region
      $region21: #{tpu_custom_call.1} parent=5 // pred_check
        %p144 = pneg %p143
      $region22: #{tpu_custom_call.1} parent=5 // pred_check_branch
        %146 = sbr.rel (%p144) target = $region24
      $region23: #{tpu_custom_call.1} parent=5 // pred_region
        // Predicated region
        $region25: #{tpu_custom_call.1} parent=23 // pred_check
          %p147 = pneg %p46
        $region26: #{tpu_custom_call.1} parent=23 // pred_check_branch
          %149 = sbr.rel (%p147) target = $region28
        $region27: #{tpu_custom_call.1} parent=23 // pred_region
          %p150 = scmp.lt.s32.totalorder %s19, 1
          %s151 = scalar_select %p150, %s19, 1
          %p152 = scmp.lt.s32.totalorder %s20, 0
          %s153 = scalar_select %p152, %s20, 0
          %s154 = smul.addr %s153, 54
          %s155 = smul.addr %s151, 54
          %s156 = sadd.s32 %s154, %s155
          %s157 = smul.addr %s156, 8
          %s158 = scalar_lea.vmem %s0, %s157
        $region28: #{tpu_custom_call.1} parent=23 // pred_fallthru
          _
      $region24: #{tpu_custom_call.1} parent=5 // pred_fallthru
        _
      %p159 = scmp.le.s32.totalorder 1, %s12
      %p160 = scmp.lt.s32.totalorder %s12, 3
      %p161 = pnand %p159, %p160
      %p162 = pneg %p161
      // Predicated region
      $region29: #{tpu_custom_call.1} parent=5 // pred_check
        _
      $region30: #{tpu_custom_call.1} parent=5 // pred_check_branch
        %164 = sbr.rel (%p161) target = $region32
      $region31: #{tpu_custom_call.1} parent=5 // pred_region
        %s165 = ssub.s32 %s12, 1
        %p166 = scmp.lt.s32.totalorder %s21, 1
        %s167 = scalar_select %p166, %s21, 1
        %p168 = scmp.lt.s32.totalorder %s22, 0
        %s169 = scalar_select %p168, %s22, 0
        %s170 = smul.addr %s169, 54
        %s171 = smul.addr %s167, 54
        %s172 = sadd.s32 %s170, %s171
        %s173 = smul.addr %s172, 8
        %s174 = scalar_lea.vmem %s0, %s173
        %p175 = pneg %p52
        %p176 = pneg %p49
        %p177 = pneg %p73
        %p178 = pneg %p70
        %p179 = pneg %p94
        %p180 = pneg %p91
        %p181 = pneg %p122
        %p182 = pneg %p119
        %s183 = sand.u32 %s109, 1
        %s184 = scalar_lea.sflag [#allocation3], %s183
        %s185 = sand.u32 %s109, 1
        %s186 = smul.addr %s185, 256
        %s187 = scalar_lea.vmem [#allocation2], %s186
        %p188 = scmp.lt.s32.totalorder %s21, 1
        %s189 = scalar_select %p188, %s21, 1
        %p190 = scmp.lt.s32.totalorder %s22, 0
        %s191 = scalar_select %p190, %s22, 0
        %s192 = smul.addr %s191, 54
        %s193 = smul.addr %s189, 54
        %s194 = sadd.s32 %s192, %s193
        %s195 = smul.addr %s194, 8
        %s196 = scalar_lea.vmem %s0, %s195
        %s197 = smul.u32 16, %s22
        %v198 = vld [vmem:[%s196] sm:$0xff]
        %v199 = vld [vmem:[%s196 + $0x8] sm:$0xff]
        %v200 = vld [vmem:[%s196 + $0x18] sm:$0xff]
        %v201 = vld [vmem:[%s196 + $0x20] sm:$0xff]
        %v202 = vld [vmem:[%s196 + $0x30] sm:$0xff]
        %v203 = vld [vmem:[%s196 + $0x38] sm:$0xff]
        %v204 = vld [vmem:[%s196 + $0x48] sm:$0xff]
        %v205 = vld [vmem:[%s196 + $0x50] sm:$0xff]
        %v206 = vld [vmem:[%s196 + $0x60] sm:$0xff]
        %v207 = vld [vmem:[%s196 + $0x68] sm:$0xff]
        %v208 = vld [vmem:[%s196 + $0x78] sm:$0xff]
        %v209 = vld [vmem:[%s196 + $0x80] sm:$0xff]
        %v210 = vld [vmem:[%s196 + $0x90] sm:$0xff]
        %v211 = vld [vmem:[%s196 + $0x98] sm:$0xff]
        %v212 = vld [vmem:[%s196 + $0xa8] sm:$0xff]
        %v213 = vld [vmem:[%s196 + $0xb0] sm:$0xff]
        %v214 = vld [vmem:[%s196 + $0xc0] sm:$0xff]
        %v215 = vld [vmem:[%s196 + $0xc8] sm:$0xff]
        %v216 = vld [vmem:[%s196 + $0xd8] sm:$0xff]
        %v217 = vld [vmem:[%s196 + $0xe0] sm:$0xff]
        %v218 = vld [vmem:[%s196 + $0xf0] sm:$0xff]
        %v219 = vld [vmem:[%s196 + $0xf8] sm:$0xff]
        %v220 = vld [vmem:[%s196 + $0x108] sm:$0xff]
        %v221 = vld [vmem:[%s196 + $0x110] sm:$0xff]
        %v222 = vld [vmem:[%s196 + $0x120] sm:$0xff]
        %v223 = vld [vmem:[%s196 + $0x128] sm:$0xff]
        %v224 = vld [vmem:[%s196 + $0x138] sm:$0xff]
        %v225 = vld [vmem:[%s196 + $0x140] sm:$0xff]
        %v226 = vld [vmem:[%s196 + $0x150] sm:$0xff]
        %v227 = vld [vmem:[%s196 + $0x158] sm:$0xff]
        %v228 = vld [vmem:[%s196 + $0x168] sm:$0xff]
        %v229 = vld [vmem:[%s196 + $0x170] sm:$0xff]
        %v230 = vld [vmem:[%s1] sm:$0x1]
        %v231 = vperm.slane %v230, 0
        %v232 = vmul.f32 %v198, %v231
        %v233 = vmul.f32 %v199, %v231
        %v234 = vmul.f32 %v200, %v231
        %v235 = vmul.f32 %v201, %v231
        %v236 = vmul.f32 %v202, %v231
        %v237 = vmul.f32 %v203, %v231
        %v238 = vmul.f32 %v204, %v231
        %v239 = vmul.f32 %v205, %v231
        %v240 = vmul.f32 %v206, %v231
        %v241 = vmul.f32 %v207, %v231
        %v242 = vmul.f32 %v208, %v231
        %v243 = vmul.f32 %v209, %v231
        %v244 = vmul.f32 %v210, %v231
        %v245 = vmul.f32 %v211, %v231
        %v246 = vmul.f32 %v212, %v231
        %v247 = vmul.f32 %v213, %v231
        %v248 = vmul.f32 %v214, %v231
        %v249 = vmul.f32 %v215, %v231
        %v250 = vmul.f32 %v216, %v231
        %v251 = vmul.f32 %v217, %v231
        %v252 = vmul.f32 %v218, %v231
        %v253 = vmul.f32 %v219, %v231
        %v254 = vmul.f32 %v220, %v231
        %v255 = vmul.f32 %v221, %v231
        %v256 = vmul.f32 %v222, %v231
        %v257 = vmul.f32 %v223, %v231
        %v258 = vmul.f32 %v224, %v231
        %v259 = vmul.f32 %v225, %v231
        %v260 = vmul.f32 %v226, %v231
        %v261 = vmul.f32 %v227, %v231
        %v262 = vmul.f32 %v228, %v231
        %v263 = vmul.f32 %v229, %v231
        %v264 = vadd.f32 %v232, 0.0
        %v265 = vadd.f32 %v233, 0.0
        %v266 = vadd.f32 %v234, 0.0
        %v267 = vadd.f32 %v235, 0.0
        %v268 = vadd.f32 %v236, 0.0
        %v269 = vadd.f32 %v237, 0.0
        %v270 = vadd.f32 %v238, 0.0
        %v271 = vadd.f32 %v239, 0.0
        %v272 = vadd.f32 %v240, 0.0
        %v273 = vadd.f32 %v241, 0.0
        %v274 = vadd.f32 %v242, 0.0
        %v275 = vadd.f32 %v243, 0.0
        %v276 = vadd.f32 %v244, 0.0
        %v277 = vadd.f32 %v245, 0.0
        %v278 = vadd.f32 %v246, 0.0
        %v279 = vadd.f32 %v247, 0.0
        %v280 = vadd.f32 %v248, 0.0
        %v281 = vadd.f32 %v249, 0.0
        %v282 = vadd.f32 %v250, 0.0
        %v283 = vadd.f32 %v251, 0.0
        %v284 = vadd.f32 %v252, 0.0
        %v285 = vadd.f32 %v253, 0.0
        %v286 = vadd.f32 %v254, 0.0
        %v287 = vadd.f32 %v255, 0.0
        %v288 = vadd.f32 %v256, 0.0
        %v289 = vadd.f32 %v257, 0.0
        %v290 = vadd.f32 %v258, 0.0
        %v291 = vadd.f32 %v259, 0.0
        %v292 = vadd.f32 %v260, 0.0
        %v293 = vadd.f32 %v261, 0.0
        %v294 = vadd.f32 %v262, 0.0
        %v295 = vadd.f32 %v263, 0.0
        %v296 = vld [vmem:[%s196 + $0x1] sm:$0xff]
        %v297 = vld [vmem:[%s196 + $0x9] sm:$0xff]
        %v298 = vld [vmem:[%s196 + $0x19] sm:$0xff]
        %v299 = vld [vmem:[%s196 + $0x21] sm:$0xff]
        %v300 = vld [vmem:[%s196 + $0x31] sm:$0xff]
        %v301 = vld [vmem:[%s196 + $0x39] sm:$0xff]
        %v302 = vld [vmem:[%s196 + $0x49] sm:$0xff]
        %v303 = vld [vmem:[%s196 + $0x51] sm:$0xff]
        %v304 = vld [vmem:[%s196 + $0x61] sm:$0xff]
        %v305 = vld [vmem:[%s196 + $0x69] sm:$0xff]
        %v306 = vld [vmem:[%s196 + $0x79] sm:$0xff]
        %v307 = vld [vmem:[%s196 + $0x81] sm:$0xff]
        %v308 = vld [vmem:[%s196 + $0x91] sm:$0xff]
        %v309 = vld [vmem:[%s196 + $0x99] sm:$0xff]
        %v310 = vld [vmem:[%s196 + $0xa9] sm:$0xff]
        %v311 = vld [vmem:[%s196 + $0xb1] sm:$0xff]
        %v312 = vld [vmem:[%s196 + $0xc1] sm:$0xff]
        %v313 = vld [vmem:[%s196 + $0xc9] sm:$0xff]
        %v314 = vld [vmem:[%s196 + $0xd9] sm:$0xff]
        %v315 = vld [vmem:[%s196 + $0xe1] sm:$0xff]
        %v316 = vld [vmem:[%s196 + $0xf1] sm:$0xff]
        %v317 = vld [vmem:[%s196 + $0xf9] sm:$0xff]
        %v318 = vld [vmem:[%s196 + $0x109] sm:$0xff]
        %v319 = vld [vmem:[%s196 + $0x111] sm:$0xff]
        %v320 = vld [vmem:[%s196 + $0x121] sm:$0xff]
        %v321 = vld [vmem:[%s196 + $0x129] sm:$0xff]
        %v322 = vld [vmem:[%s196 + $0x139] sm:$0xff]
        %v323 = vld [vmem:[%s196 + $0x141] sm:$0xff]
        %v324 = vld [vmem:[%s196 + $0x151] sm:$0xff]
        %v325 = vld [vmem:[%s196 + $0x159] sm:$0xff]
        %v326 = vld [vmem:[%s196 + $0x169] sm:$0xff]
        %v327 = vld [vmem:[%s196 + $0x171] sm:$0xff]
        %v328 = vld [vmem:[%s1 + $0x1] sm:$0x1]
        %v329 = vperm.slane %v328, 0
        %v330 = vmul.f32 %v296, %v329
        %v331 = vmul.f32 %v297, %v329
        %v332 = vmul.f32 %v298, %v329
        %v333 = vmul.f32 %v299, %v329
        %v334 = vmul.f32 %v300, %v329
        %v335 = vmul.f32 %v301, %v329
        %v336 = vmul.f32 %v302, %v329
        %v337 = vmul.f32 %v303, %v329
        %v338 = vmul.f32 %v304, %v329
        %v339 = vmul.f32 %v305, %v329
        %v340 = vmul.f32 %v306, %v329
        %v341 = vmul.f32 %v307, %v329
        %v342 = vmul.f32 %v308, %v329
        %v343 = vmul.f32 %v309, %v329
        %v344 = vmul.f32 %v310, %v329
        %v345 = vmul.f32 %v311, %v329
        %v346 = vmul.f32 %v312, %v329
        %v347 = vmul.f32 %v313, %v329
        %v348 = vmul.f32 %v314, %v329
        %v349 = vmul.f32 %v315, %v329
        %v350 = vmul.f32 %v316, %v329
        %v351 = vmul.f32 %v317, %v329
        %v352 = vmul.f32 %v318, %v329
        %v353 = vmul.f32 %v319, %v329
        %v354 = vmul.f32 %v320, %v329
        %v355 = vmul.f32 %v321, %v329
        %v356 = vmul.f32 %v322, %v329
        %v357 = vmul.f32 %v323, %v329
        %v358 = vmul.f32 %v324, %v329
        %v359 = vmul.f32 %v325, %v329
        %v360 = vmul.f32 %v326, %v329
        %v361 = vmul.f32 %v327, %v329
        %v362 = vadd.f32 %v264, %v330
        %v363 = vadd.f32 %v265, %v331
        %v364 = vadd.f32 %v266, %v332
        %v365 = vadd.f32 %v267, %v333
        %v366 = vadd.f32 %v268, %v334
        %v367 = vadd.f32 %v269, %v335
        %v368 = vadd.f32 %v270, %v336
        %v369 = vadd.f32 %v271, %v337
        %v370 = vadd.f32 %v272, %v338
        %v371 = vadd.f32 %v273, %v339
        %v372 = vadd.f32 %v274, %v340
        %v373 = vadd.f32 %v275, %v341
        %v374 = vadd.f32 %v276, %v342
        %v375 = vadd.f32 %v277, %v343
        %v376 = vadd.f32 %v278, %v344
        %v377 = vadd.f32 %v279, %v345
        %v378 = vadd.f32 %v280, %v346
        %v379 = vadd.f32 %v281, %v347
        %v380 = vadd.f32 %v282, %v348
        %v381 = vadd.f32 %v283, %v349
        %v382 = vadd.f32 %v284, %v350
        %v383 = vadd.f32 %v285, %v351
        %v384 = vadd.f32 %v286, %v352
        %v385 = vadd.f32 %v287, %v353
        %v386 = vadd.f32 %v288, %v354
        %v387 = vadd.f32 %v289, %v355
        %v388 = vadd.f32 %v290, %v356
        %v389 = vadd.f32 %v291, %v357
        %v390 = vadd.f32 %v292, %v358
        %v391 = vadd.f32 %v293, %v359
        %v392 = vadd.f32 %v294, %v360
        %v393 = vadd.f32 %v295, %v361
        %v394 = vld [vmem:[%s196 + $0x2] sm:$0xff]
        %v395 = vld [vmem:[%s196 + $0xa] sm:$0xff]
        %v396 = vld [vmem:[%s196 + $0x1a] sm:$0xff]
        %v397 = vld [vmem:[%s196 + $0x22] sm:$0xff]
        %v398 = vld [vmem:[%s196 + $0x32] sm:$0xff]
        %v399 = vld [vmem:[%s196 + $0x3a] sm:$0xff]
        %v400 = vld [vmem:[%s196 + $0x4a] sm:$0xff]
        %v401 = vld [vmem:[%s196 + $0x52] sm:$0xff]
        %v402 = vld [vmem:[%s196 + $0x62] sm:$0xff]
        %v403 = vld [vmem:[%s196 + $0x6a] sm:$0xff]
        %v404 = vld [vmem:[%s196 + $0x7a] sm:$0xff]
        %v405 = vld [vmem:[%s196 + $0x82] sm:$0xff]
        %v406 = vld [vmem:[%s196 + $0x92] sm:$0xff]
        %v407 = vld [vmem:[%s196 + $0x9a] sm:$0xff]
        %v408 = vld [vmem:[%s196 + $0xaa] sm:$0xff]
        %v409 = vld [vmem:[%s196 + $0xb2] sm:$0xff]
        %v410 = vld [vmem:[%s196 + $0xc2] sm:$0xff]
        %v411 = vld [vmem:[%s196 + $0xca] sm:$0xff]
        %v412 = vld [vmem:[%s196 + $0xda] sm:$0xff]
        %v413 = vld [vmem:[%s196 + $0xe2] sm:$0xff]
        %v414 = vld [vmem:[%s196 + $0xf2] sm:$0xff]
        %v415 = vld [vmem:[%s196 + $0xfa] sm:$0xff]
        %v416 = vld [vmem:[%s196 + $0x10a] sm:$0xff]
        %v417 = vld [vmem:[%s196 + $0x112] sm:$0xff]
        %v418 = vld [vmem:[%s196 + $0x122] sm:$0xff]
        %v419 = vld [vmem:[%s196 + $0x12a] sm:$0xff]
        %v420 = vld [vmem:[%s196 + $0x13a] sm:$0xff]
        %v421 = vld [vmem:[%s196 + $0x142] sm:$0xff]
        %v422 = vld [vmem:[%s196 + $0x152] sm:$0xff]
        %v423 = vld [vmem:[%s196 + $0x15a] sm:$0xff]
        %v424 = vld [vmem:[%s196 + $0x16a] sm:$0xff]
        %v425 = vld [vmem:[%s196 + $0x172] sm:$0xff]
        %v426 = vld [vmem:[%s1 + $0x2] sm:$0x1]
        %v427 = vperm.slane %v426, 0
        %v428 = vmul.f32 %v394, %v427
        %v429 = vmul.f32 %v395, %v427
        %v430 = vmul.f32 %v396, %v427
        %v431 = vmul.f32 %v397, %v427
        %v432 = vmul.f32 %v398, %v427
        %v433 = vmul.f32 %v399, %v427
        %v434 = vmul.f32 %v400, %v427
        %v435 = vmul.f32 %v401, %v427
        %v436 = vmul.f32 %v402, %v427
        %v437 = vmul.f32 %v403, %v427
        %v438 = vmul.f32 %v404, %v427
        %v439 = vmul.f32 %v405, %v427
        %v440 = vmul.f32 %v406, %v427
        %v441 = vmul.f32 %v407, %v427
        %v442 = vmul.f32 %v408, %v427
        %v443 = vmul.f32 %v409, %v427
        %v444 = vmul.f32 %v410, %v427
        %v445 = vmul.f32 %v411, %v427
        %v446 = vmul.f32 %v412, %v427
        %v447 = vmul.f32 %v413, %v427
        %v448 = vmul.f32 %v414, %v427
        %v449 = vmul.f32 %v415, %v427
        %v450 = vmul.f32 %v416, %v427
        %v451 = vmul.f32 %v417, %v427
        %v452 = vmul.f32 %v418, %v427
        %v453 = vmul.f32 %v419, %v427
        %v454 = vmul.f32 %v420, %v427
        %v455 = vmul.f32 %v421, %v427
        %v456 = vmul.f32 %v422, %v427
        %v457 = vmul.f32 %v423, %v427
        %v458 = vmul.f32 %v424, %v427
        %v459 = vmul.f32 %v425, %v427
        %v460 = vadd.f32 %v362, %v428
        %v461 = vadd.f32 %v363, %v429
        %v462 = vadd.f32 %v364, %v430
        %v463 = vadd.f32 %v365, %v431
        %v464 = vadd.f32 %v366, %v432
        %v465 = vadd.f32 %v367, %v433
        %v466 = vadd.f32 %v368, %v434
        %v467 = vadd.f32 %v369, %v435
        %v468 = vadd.f32 %v370, %v436
        %v469 = vadd.f32 %v371, %v437
        %v470 = vadd.f32 %v372, %v438
        %v471 = vadd.f32 %v373, %v439
        %v472 = vadd.f32 %v374, %v440
        %v473 = vadd.f32 %v375, %v441
        %v474 = vadd.f32 %v376, %v442
        %v475 = vadd.f32 %v377, %v443
        %v476 = vadd.f32 %v378, %v444
        %v477 = vadd.f32 %v379, %v445
        %v478 = vadd.f32 %v380, %v446
        %v479 = vadd.f32 %v381, %v447
        %v480 = vadd.f32 %v382, %v448
        %v481 = vadd.f32 %v383, %v449
        %v482 = vadd.f32 %v384, %v450
        %v483 = vadd.f32 %v385, %v451
        %v484 = vadd.f32 %v386, %v452
        %v485 = vadd.f32 %v387, %v453
        %v486 = vadd.f32 %v388, %v454
        %v487 = vadd.f32 %v389, %v455
        %v488 = vadd.f32 %v390, %v456
        %v489 = vadd.f32 %v391, %v457
        %v490 = vadd.f32 %v392, %v458
        %v491 = vadd.f32 %v393, %v459
        %s492 = scalar_lea.vmem %s196, 24
        %v493 = vld [vmem:[%s492] sm:$0xff]
        %v494 = vld [vmem:[%s492 + $0x8] sm:$0xff]
        %v495 = vld [vmem:[%s492 + $0x18] sm:$0xff]
        %v496 = vld [vmem:[%s492 + $0x20] sm:$0xff]
        %v497 = vld [vmem:[%s492 + $0x30] sm:$0xff]
        %v498 = vld [vmem:[%s492 + $0x38] sm:$0xff]
        %v499 = vld [vmem:[%s492 + $0x48] sm:$0xff]
        %v500 = vld [vmem:[%s492 + $0x50] sm:$0xff]
        %v501 = vld [vmem:[%s492 + $0x60] sm:$0xff]
        %v502 = vld [vmem:[%s492 + $0x68] sm:$0xff]
        %v503 = vld [vmem:[%s492 + $0x78] sm:$0xff]
        %v504 = vld [vmem:[%s492 + $0x80] sm:$0xff]
        %v505 = vld [vmem:[%s492 + $0x90] sm:$0xff]
        %v506 = vld [vmem:[%s492 + $0x98] sm:$0xff]
        %v507 = vld [vmem:[%s492 + $0xa8] sm:$0xff]
        %v508 = vld [vmem:[%s492 + $0xb0] sm:$0xff]
        %v509 = vld [vmem:[%s492 + $0xc0] sm:$0xff]
        %v510 = vld [vmem:[%s492 + $0xc8] sm:$0xff]
        %v511 = vld [vmem:[%s492 + $0xd8] sm:$0xff]
        %v512 = vld [vmem:[%s492 + $0xe0] sm:$0xff]
        %v513 = vld [vmem:[%s492 + $0xf0] sm:$0xff]
        %v514 = vld [vmem:[%s492 + $0xf8] sm:$0xff]
        %v515 = vld [vmem:[%s492 + $0x108] sm:$0xff]
        %v516 = vld [vmem:[%s492 + $0x110] sm:$0xff]
        %v517 = vld [vmem:[%s492 + $0x120] sm:$0xff]
        %v518 = vld [vmem:[%s492 + $0x128] sm:$0xff]
        %v519 = vld [vmem:[%s492 + $0x138] sm:$0xff]
        %v520 = vld [vmem:[%s492 + $0x140] sm:$0xff]
        %v521 = vld [vmem:[%s492 + $0x150] sm:$0xff]
        %v522 = vld [vmem:[%s492 + $0x158] sm:$0xff]
        %v523 = vld [vmem:[%s492 + $0x168] sm:$0xff]
        %v524 = vld [vmem:[%s492 + $0x170] sm:$0xff]
        %s525 = scalar_lea.vmem %s1, 4
        %v526 = vld [vmem:[%s525] sm:$0x1]
        %v527 = vperm.slane %v526, 0
        %v528 = vmul.f32 %v493, %v527
        %v529 = vmul.f32 %v494, %v527
        %v530 = vmul.f32 %v495, %v527
        %v531 = vmul.f32 %v496, %v527
        %v532 = vmul.f32 %v497, %v527
        %v533 = vmul.f32 %v498, %v527
        %v534 = vmul.f32 %v499, %v527
        %v535 = vmul.f32 %v500, %v527
        %v536 = vmul.f32 %v501, %v527
        %v537 = vmul.f32 %v502, %v527
        %v538 = vmul.f32 %v503, %v527
        %v539 = vmul.f32 %v504, %v527
        %v540 = vmul.f32 %v505, %v527
        %v541 = vmul.f32 %v506, %v527
        %v542 = vmul.f32 %v507, %v527
        %v543 = vmul.f32 %v508, %v527
        %v544 = vmul.f32 %v509, %v527
        %v545 = vmul.f32 %v510, %v527
        %v546 = vmul.f32 %v511, %v527
        %v547 = vmul.f32 %v512, %v527
        %v548 = vmul.f32 %v513, %v527
        %v549 = vmul.f32 %v514, %v527
        %v550 = vmul.f32 %v515, %v527
        %v551 = vmul.f32 %v516, %v527
        %v552 = vmul.f32 %v517, %v527
        %v553 = vmul.f32 %v518, %v527
        %v554 = vmul.f32 %v519, %v527
        %v555 = vmul.f32 %v520, %v527
        %v556 = vmul.f32 %v521, %v527
        %v557 = vmul.f32 %v522, %v527
        %v558 = vmul.f32 %v523, %v527
        %v559 = vmul.f32 %v524, %v527
        %v560 = vadd.f32 %v460, %v528
        %v561 = vadd.f32 %v461, %v529
        %v562 = vadd.f32 %v462, %v530
        %v563 = vadd.f32 %v463, %v531
        %v564 = vadd.f32 %v464, %v532
        %v565 = vadd.f32 %v465, %v533
        %v566 = vadd.f32 %v466, %v534
        %v567 = vadd.f32 %v467, %v535
        %v568 = vadd.f32 %v468, %v536
        %v569 = vadd.f32 %v469, %v537
        %v570 = vadd.f32 %v470, %v538
        %v571 = vadd.f32 %v471, %v539
        %v572 = vadd.f32 %v472, %v540
        %v573 = vadd.f32 %v473, %v541
        %v574 = vadd.f32 %v474, %v542
        %v575 = vadd.f32 %v475, %v543
        %v576 = vadd.f32 %v476, %v544
        %v577 = vadd.f32 %v477, %v545
        %v578 = vadd.f32 %v478, %v546
        %v579 = vadd.f32 %v479, %v547
        %v580 = vadd.f32 %v480, %v548
        %v581 = vadd.f32 %v481, %v549
        %v582 = vadd.f32 %v482, %v550
        %v583 = vadd.f32 %v483, %v551
        %v584 = vadd.f32 %v484, %v552
        %v585 = vadd.f32 %v485, %v553
        %v586 = vadd.f32 %v486, %v554
        %v587 = vadd.f32 %v487, %v555
        %v588 = vadd.f32 %v488, %v556
        %v589 = vadd.f32 %v489, %v557
        %v590 = vadd.f32 %v490, %v558
        %v591 = vadd.f32 %v491, %v559
        %v592 = vld [vmem:[%s492 + $0x1] sm:$0xff]
        %v593 = vld [vmem:[%s492 + $0x9] sm:$0xff]
        %v594 = vld [vmem:[%s492 + $0x19] sm:$0xff]
        %v595 = vld [vmem:[%s492 + $0x21] sm:$0xff]
        %v596 = vld [vmem:[%s492 + $0x31] sm:$0xff]
        %v597 = vld [vmem:[%s492 + $0x39] sm:$0xff]
        %v598 = vld [vmem:[%s492 + $0x49] sm:$0xff]
        %v599 = vld [vmem:[%s492 + $0x51] sm:$0xff]
        %v600 = vld [vmem:[%s492 + $0x61] sm:$0xff]
        %v601 = vld [vmem:[%s492 + $0x69] sm:$0xff]
        %v602 = vld [vmem:[%s492 + $0x79] sm:$0xff]
        %v603 = vld [vmem:[%s492 + $0x81] sm:$0xff]
        %v604 = vld [vmem:[%s492 + $0x91] sm:$0xff]
        %v605 = vld [vmem:[%s492 + $0x99] sm:$0xff]
        %v606 = vld [vmem:[%s492 + $0xa9] sm:$0xff]
        %v607 = vld [vmem:[%s492 + $0xb1] sm:$0xff]
        %v608 = vld [vmem:[%s492 + $0xc1] sm:$0xff]
        %v609 = vld [vmem:[%s492 + $0xc9] sm:$0xff]
        %v610 = vld [vmem:[%s492 + $0xd9] sm:$0xff]
        %v611 = vld [vmem:[%s492 + $0xe1] sm:$0xff]
        %v612 = vld [vmem:[%s492 + $0xf1] sm:$0xff]
        %v613 = vld [vmem:[%s492 + $0xf9] sm:$0xff]
        %v614 = vld [vmem:[%s492 + $0x109] sm:$0xff]
        %v615 = vld [vmem:[%s492 + $0x111] sm:$0xff]
        %v616 = vld [vmem:[%s492 + $0x121] sm:$0xff]
        %v617 = vld [vmem:[%s492 + $0x129] sm:$0xff]
        %v618 = vld [vmem:[%s492 + $0x139] sm:$0xff]
        %v619 = vld [vmem:[%s492 + $0x141] sm:$0xff]
        %v620 = vld [vmem:[%s492 + $0x151] sm:$0xff]
        %v621 = vld [vmem:[%s492 + $0x159] sm:$0xff]
        %v622 = vld [vmem:[%s492 + $0x169] sm:$0xff]
        %v623 = vld [vmem:[%s492 + $0x171] sm:$0xff]
        %v624 = vld [vmem:[%s525 + $0x1] sm:$0x1]
        %v625 = vperm.slane %v624, 0
        %v626 = vmul.f32 %v592, %v625
        %v627 = vmul.f32 %v593, %v625
        %v628 = vmul.f32 %v594, %v625
        %v629 = vmul.f32 %v595, %v625
        %v630 = vmul.f32 %v596, %v625
        %v631 = vmul.f32 %v597, %v625
        %v632 = vmul.f32 %v598, %v625
        %v633 = vmul.f32 %v599, %v625
        %v634 = vmul.f32 %v600, %v625
        %v635 = vmul.f32 %v601, %v625
        %v636 = vmul.f32 %v602, %v625
        %v637 = vmul.f32 %v603, %v625
        %v638 = vmul.f32 %v604, %v625
        %v639 = vmul.f32 %v605, %v625
        %v640 = vmul.f32 %v606, %v625
        %v641 = vmul.f32 %v607, %v625
        %v642 = vmul.f32 %v608, %v625
        %v643 = vmul.f32 %v609, %v625
        %v644 = vmul.f32 %v610, %v625
        %v645 = vmul.f32 %v611, %v625
        %v646 = vmul.f32 %v612, %v625
        %v647 = vmul.f32 %v613, %v625
        %v648 = vmul.f32 %v614, %v625
        %v649 = vmul.f32 %v615, %v625
        %v650 = vmul.f32 %v616, %v625
        %v651 = vmul.f32 %v617, %v625
        %v652 = vmul.f32 %v618, %v625
        %v653 = vmul.f32 %v619, %v625
        %v654 = vmul.f32 %v620, %v625
        %v655 = vmul.f32 %v621, %v625
        %v656 = vmul.f32 %v622, %v625
        %v657 = vmul.f32 %v623, %v625
        %v658 = vadd.f32 %v560, %v626
        %v659 = vadd.f32 %v561, %v627
        %v660 = vadd.f32 %v562, %v628
        %v661 = vadd.f32 %v563, %v629
        %v662 = vadd.f32 %v564, %v630
        %v663 = vadd.f32 %v565, %v631
        %v664 = vadd.f32 %v566, %v632
        %v665 = vadd.f32 %v567, %v633
        %v666 = vadd.f32 %v568, %v634
        %v667 = vadd.f32 %v569, %v635
        %v668 = vadd.f32 %v570, %v636
        %v669 = vadd.f32 %v571, %v637
        %v670 = vadd.f32 %v572, %v638
        %v671 = vadd.f32 %v573, %v639
        %v672 = vadd.f32 %v574, %v640
        %v673 = vadd.f32 %v575, %v641
        %v674 = vadd.f32 %v576, %v642
        %v675 = vadd.f32 %v577, %v643
        %v676 = vadd.f32 %v578, %v644
        %v677 = vadd.f32 %v579, %v645
        %v678 = vadd.f32 %v580, %v646
        %v679 = vadd.f32 %v581, %v647
        %v680 = vadd.f32 %v582, %v648
        %v681 = vadd.f32 %v583, %v649
        %v682 = vadd.f32 %v584, %v650
        %v683 = vadd.f32 %v585, %v651
        %v684 = vadd.f32 %v586, %v652
        %v685 = vadd.f32 %v587, %v653
        %v686 = vadd.f32 %v588, %v654
        %v687 = vadd.f32 %v589, %v655
        %v688 = vadd.f32 %v590, %v656
        %v689 = vadd.f32 %v591, %v657
        %v690 = vld [vmem:[%s492 + $0x2] sm:$0xff]
        %v691 = vld [vmem:[%s492 + $0xa] sm:$0xff]
        %v692 = vld [vmem:[%s492 + $0x1a] sm:$0xff]
        %v693 = vld [vmem:[%s492 + $0x22] sm:$0xff]
        %v694 = vld [vmem:[%s492 + $0x32] sm:$0xff]
        %v695 = vld [vmem:[%s492 + $0x3a] sm:$0xff]
        %v696 = vld [vmem:[%s492 + $0x4a] sm:$0xff]
        %v697 = vld [vmem:[%s492 + $0x52] sm:$0xff]
        %v698 = vld [vmem:[%s492 + $0x62] sm:$0xff]
        %v699 = vld [vmem:[%s492 + $0x6a] sm:$0xff]
        %v700 = vld [vmem:[%s492 + $0x7a] sm:$0xff]
        %v701 = vld [vmem:[%s492 + $0x82] sm:$0xff]
        %v702 = vld [vmem:[%s492 + $0x92] sm:$0xff]
        %v703 = vld [vmem:[%s492 + $0x9a] sm:$0xff]
        %v704 = vld [vmem:[%s492 + $0xaa] sm:$0xff]
        %v705 = vld [vmem:[%s492 + $0xb2] sm:$0xff]
        %v706 = vld [vmem:[%s492 + $0xc2] sm:$0xff]
        %v707 = vld [vmem:[%s492 + $0xca] sm:$0xff]
        %v708 = vld [vmem:[%s492 + $0xda] sm:$0xff]
        %v709 = vld [vmem:[%s492 + $0xe2] sm:$0xff]
        %v710 = vld [vmem:[%s492 + $0xf2] sm:$0xff]
        %v711 = vld [vmem:[%s492 + $0xfa] sm:$0xff]
        %v712 = vld [vmem:[%s492 + $0x10a] sm:$0xff]
        %v713 = vld [vmem:[%s492 + $0x112] sm:$0xff]
        %v714 = vld [vmem:[%s492 + $0x122] sm:$0xff]
        %v715 = vld [vmem:[%s492 + $0x12a] sm:$0xff]
        %v716 = vld [vmem:[%s492 + $0x13a] sm:$0xff]
        %v717 = vld [vmem:[%s492 + $0x142] sm:$0xff]
        %v718 = vld [vmem:[%s492 + $0x152] sm:$0xff]
        %v719 = vld [vmem:[%s492 + $0x15a] sm:$0xff]
        %v720 = vld [vmem:[%s492 + $0x16a] sm:$0xff]
        %v721 = vld [vmem:[%s492 + $0x172] sm:$0xff]
        %v722 = vld [vmem:[%s525 + $0x2] sm:$0x1]
        %v723 = vperm.slane %v722, 0
        %v724 = vmul.f32 %v690, %v723
        %v725 = vmul.f32 %v691, %v723
        %v726 = vmul.f32 %v692, %v723
        %v727 = vmul.f32 %v693, %v723
        %v728 = vmul.f32 %v694, %v723
        %v729 = vmul.f32 %v695, %v723
        %v730 = vmul.f32 %v696, %v723
        %v731 = vmul.f32 %v697, %v723
        %v732 = vmul.f32 %v698, %v723
        %v733 = vmul.f32 %v699, %v723
        %v734 = vmul.f32 %v700, %v723
        %v735 = vmul.f32 %v701, %v723
        %v736 = vmul.f32 %v702, %v723
        %v737 = vmul.f32 %v703, %v723
        %v738 = vmul.f32 %v704, %v723
        %v739 = vmul.f32 %v705, %v723
        %v740 = vmul.f32 %v706, %v723
        %v741 = vmul.f32 %v707, %v723
        %v742 = vmul.f32 %v708, %v723
        %v743 = vmul.f32 %v709, %v723
        %v744 = vmul.f32 %v710, %v723
        %v745 = vmul.f32 %v711, %v723
        %v746 = vmul.f32 %v712, %v723
        %v747 = vmul.f32 %v713, %v723
        %v748 = vmul.f32 %v714, %v723
        %v749 = vmul.f32 %v715, %v723
        %v750 = vmul.f32 %v716, %v723
        %v751 = vmul.f32 %v717, %v723
        %v752 = vmul.f32 %v718, %v723
        %v753 = vmul.f32 %v719, %v723
        %v754 = vmul.f32 %v720, %v723
        %v755 = vmul.f32 %v721, %v723
        %v756 = vadd.f32 %v658, %v724
        %v757 = vadd.f32 %v659, %v725
        %v758 = vadd.f32 %v660, %v726
        %v759 = vadd.f32 %v661, %v727
        %v760 = vadd.f32 %v662, %v728
        %v761 = vadd.f32 %v663, %v729
        %v762 = vadd.f32 %v664, %v730
        %v763 = vadd.f32 %v665, %v731
        %v764 = vadd.f32 %v666, %v732
        %v765 = vadd.f32 %v667, %v733
        %v766 = vadd.f32 %v668, %v734
        %v767 = vadd.f32 %v669, %v735
        %v768 = vadd.f32 %v670, %v736
        %v769 = vadd.f32 %v671, %v737
        %v770 = vadd.f32 %v672, %v738
        %v771 = vadd.f32 %v673, %v739
        %v772 = vadd.f32 %v674, %v740
        %v773 = vadd.f32 %v675, %v741
        %v774 = vadd.f32 %v676, %v742
        %v775 = vadd.f32 %v677, %v743
        %v776 = vadd.f32 %v678, %v744
        %v777 = vadd.f32 %v679, %v745
        %v778 = vadd.f32 %v680, %v746
        %v779 = vadd.f32 %v681, %v747
        %v780 = vadd.f32 %v682, %v748
        %v781 = vadd.f32 %v683, %v749
        %v782 = vadd.f32 %v684, %v750
        %v783 = vadd.f32 %v685, %v751
        %v784 = vadd.f32 %v686, %v752
        %v785 = vadd.f32 %v687, %v753
        %v786 = vadd.f32 %v688, %v754
        %v787 = vadd.f32 %v689, %v755
        %s788 = scalar_lea.vmem %s196, 48
        %v789 = vld [vmem:[%s788] sm:$0xff]
        %v790 = vld [vmem:[%s788 + $0x8] sm:$0xff]
        %v791 = vld [vmem:[%s788 + $0x18] sm:$0xff]
        %v792 = vld [vmem:[%s788 + $0x20] sm:$0xff]
        %v793 = vld [vmem:[%s788 + $0x30] sm:$0xff]
        %v794 = vld [vmem:[%s788 + $0x38] sm:$0xff]
        %v795 = vld [vmem:[%s788 + $0x48] sm:$0xff]
        %v796 = vld [vmem:[%s788 + $0x50] sm:$0xff]
        %v797 = vld [vmem:[%s788 + $0x60] sm:$0xff]
        %v798 = vld [vmem:[%s788 + $0x68] sm:$0xff]
        %v799 = vld [vmem:[%s788 + $0x78] sm:$0xff]
        %v800 = vld [vmem:[%s788 + $0x80] sm:$0xff]
        %v801 = vld [vmem:[%s788 + $0x90] sm:$0xff]
        %v802 = vld [vmem:[%s788 + $0x98] sm:$0xff]
        %v803 = vld [vmem:[%s788 + $0xa8] sm:$0xff]
        %v804 = vld [vmem:[%s788 + $0xb0] sm:$0xff]
        %v805 = vld [vmem:[%s788 + $0xc0] sm:$0xff]
        %v806 = vld [vmem:[%s788 + $0xc8] sm:$0xff]
        %v807 = vld [vmem:[%s788 + $0xd8] sm:$0xff]
        %v808 = vld [vmem:[%s788 + $0xe0] sm:$0xff]
        %v809 = vld [vmem:[%s788 + $0xf0] sm:$0xff]
        %v810 = vld [vmem:[%s788 + $0xf8] sm:$0xff]
        %v811 = vld [vmem:[%s788 + $0x108] sm:$0xff]
        %v812 = vld [vmem:[%s788 + $0x110] sm:$0xff]
        %v813 = vld [vmem:[%s788 + $0x120] sm:$0xff]
        %v814 = vld [vmem:[%s788 + $0x128] sm:$0xff]
        %v815 = vld [vmem:[%s788 + $0x138] sm:$0xff]
        %v816 = vld [vmem:[%s788 + $0x140] sm:$0xff]
        %v817 = vld [vmem:[%s788 + $0x150] sm:$0xff]
        %v818 = vld [vmem:[%s788 + $0x158] sm:$0xff]
        %v819 = vld [vmem:[%s788 + $0x168] sm:$0xff]
        %v820 = vld [vmem:[%s788 + $0x170] sm:$0xff]
        %s821 = scalar_lea.vmem %s1, 8
        %v822 = vld [vmem:[%s821] sm:$0x1]
        %v823 = vperm.slane %v822, 0
        %v824 = vmul.f32 %v789, %v823
        %v825 = vmul.f32 %v790, %v823
        %v826 = vmul.f32 %v791, %v823
        %v827 = vmul.f32 %v792, %v823
        %v828 = vmul.f32 %v793, %v823
        %v829 = vmul.f32 %v794, %v823
        %v830 = vmul.f32 %v795, %v823
        %v831 = vmul.f32 %v796, %v823
        %v832 = vmul.f32 %v797, %v823
        %v833 = vmul.f32 %v798, %v823
        %v834 = vmul.f32 %v799, %v823
        %v835 = vmul.f32 %v800, %v823
        %v836 = vmul.f32 %v801, %v823
        %v837 = vmul.f32 %v802, %v823
        %v838 = vmul.f32 %v803, %v823
        %v839 = vmul.f32 %v804, %v823
        %v840 = vmul.f32 %v805, %v823
        %v841 = vmul.f32 %v806, %v823
        %v842 = vmul.f32 %v807, %v823
        %v843 = vmul.f32 %v808, %v823
        %v844 = vmul.f32 %v809, %v823
        %v845 = vmul.f32 %v810, %v823
        %v846 = vmul.f32 %v811, %v823
        %v847 = vmul.f32 %v812, %v823
        %v848 = vmul.f32 %v813, %v823
        %v849 = vmul.f32 %v814, %v823
        %v850 = vmul.f32 %v815, %v823
        %v851 = vmul.f32 %v816, %v823
        %v852 = vmul.f32 %v817, %v823
        %v853 = vmul.f32 %v818, %v823
        %v854 = vmul.f32 %v819, %v823
        %v855 = vmul.f32 %v820, %v823
        %v856 = vadd.f32 %v756, %v824
        %v857 = vadd.f32 %v757, %v825
        %v858 = vadd.f32 %v758, %v826
        %v859 = vadd.f32 %v759, %v827
        %v860 = vadd.f32 %v760, %v828
        %v861 = vadd.f32 %v761, %v829
        %v862 = vadd.f32 %v762, %v830
        %v863 = vadd.f32 %v763, %v831
        %v864 = vadd.f32 %v764, %v832
        %v865 = vadd.f32 %v765, %v833
        %v866 = vadd.f32 %v766, %v834
        %v867 = vadd.f32 %v767, %v835
        %v868 = vadd.f32 %v768, %v836
        %v869 = vadd.f32 %v769, %v837
        %v870 = vadd.f32 %v770, %v838
        %v871 = vadd.f32 %v771, %v839
        %v872 = vadd.f32 %v772, %v840
        %v873 = vadd.f32 %v773, %v841
        %v874 = vadd.f32 %v774, %v842
        %v875 = vadd.f32 %v775, %v843
        %v876 = vadd.f32 %v776, %v844
        %v877 = vadd.f32 %v777, %v845
        %v878 = vadd.f32 %v778, %v846
        %v879 = vadd.f32 %v779, %v847
        %v880 = vadd.f32 %v780, %v848
        %v881 = vadd.f32 %v781, %v849
        %v882 = vadd.f32 %v782, %v850
        %v883 = vadd.f32 %v783, %v851
        %v884 = vadd.f32 %v784, %v852
        %v885 = vadd.f32 %v785, %v853
        %v886 = vadd.f32 %v786, %v854
        %v887 = vadd.f32 %v787, %v855
        %v888 = vld [vmem:[%s788 + $0x1] sm:$0xff]
        %v889 = vld [vmem:[%s788 + $0x9] sm:$0xff]
        %v890 = vld [vmem:[%s788 + $0x19] sm:$0xff]
        %v891 = vld [vmem:[%s788 + $0x21] sm:$0xff]
        %v892 = vld [vmem:[%s788 + $0x31] sm:$0xff]
        %v893 = vld [vmem:[%s788 + $0x39] sm:$0xff]
        %v894 = vld [vmem:[%s788 + $0x49] sm:$0xff]
        %v895 = vld [vmem:[%s788 + $0x51] sm:$0xff]
        %v896 = vld [vmem:[%s788 + $0x61] sm:$0xff]
        %v897 = vld [vmem:[%s788 + $0x69] sm:$0xff]
        %v898 = vld [vmem:[%s788 + $0x79] sm:$0xff]
        %v899 = vld [vmem:[%s788 + $0x81] sm:$0xff]
        %v900 = vld [vmem:[%s788 + $0x91] sm:$0xff]
        %v901 = vld [vmem:[%s788 + $0x99] sm:$0xff]
        %v902 = vld [vmem:[%s788 + $0xa9] sm:$0xff]
        %v903 = vld [vmem:[%s788 + $0xb1] sm:$0xff]
        %v904 = vld [vmem:[%s788 + $0xc1] sm:$0xff]
        %v905 = vld [vmem:[%s788 + $0xc9] sm:$0xff]
        %v906 = vld [vmem:[%s788 + $0xd9] sm:$0xff]
        %v907 = vld [vmem:[%s788 + $0xe1] sm:$0xff]
        %v908 = vld [vmem:[%s788 + $0xf1] sm:$0xff]
        %v909 = vld [vmem:[%s788 + $0xf9] sm:$0xff]
        %v910 = vld [vmem:[%s788 + $0x109] sm:$0xff]
        %v911 = vld [vmem:[%s788 + $0x111] sm:$0xff]
        %v912 = vld [vmem:[%s788 + $0x121] sm:$0xff]
        %v913 = vld [vmem:[%s788 + $0x129] sm:$0xff]
        %v914 = vld [vmem:[%s788 + $0x139] sm:$0xff]
        %v915 = vld [vmem:[%s788 + $0x141] sm:$0xff]
        %v916 = vld [vmem:[%s788 + $0x151] sm:$0xff]
        %v917 = vld [vmem:[%s788 + $0x159] sm:$0xff]
        %v918 = vld [vmem:[%s788 + $0x169] sm:$0xff]
        %v919 = vld [vmem:[%s788 + $0x171] sm:$0xff]
        %v920 = vld [vmem:[%s821 + $0x1] sm:$0x1]
        %v921 = vperm.slane %v920, 0
        %v922 = vmul.f32 %v888, %v921
        %v923 = vmul.f32 %v889, %v921
        %v924 = vmul.f32 %v890, %v921
        %v925 = vmul.f32 %v891, %v921
        %v926 = vmul.f32 %v892, %v921
        %v927 = vmul.f32 %v893, %v921
        %v928 = vmul.f32 %v894, %v921
        %v929 = vmul.f32 %v895, %v921
        %v930 = vmul.f32 %v896, %v921
        %v931 = vmul.f32 %v897, %v921
        %v932 = vmul.f32 %v898, %v921
        %v933 = vmul.f32 %v899, %v921
        %v934 = vmul.f32 %v900, %v921
        %v935 = vmul.f32 %v901, %v921
        %v936 = vmul.f32 %v902, %v921
        %v937 = vmul.f32 %v903, %v921
        %v938 = vmul.f32 %v904, %v921
        %v939 = vmul.f32 %v905, %v921
        %v940 = vmul.f32 %v906, %v921
        %v941 = vmul.f32 %v907, %v921
        %v942 = vmul.f32 %v908, %v921
        %v943 = vmul.f32 %v909, %v921
        %v944 = vmul.f32 %v910, %v921
        %v945 = vmul.f32 %v911, %v921
        %v946 = vmul.f32 %v912, %v921
        %v947 = vmul.f32 %v913, %v921
        %v948 = vmul.f32 %v914, %v921
        %v949 = vmul.f32 %v915, %v921
        %v950 = vmul.f32 %v916, %v921
        %v951 = vmul.f32 %v917, %v921
        %v952 = vmul.f32 %v918, %v921
        %v953 = vmul.f32 %v919, %v921
        %v954 = vadd.f32 %v856, %v922
        %v955 = vadd.f32 %v857, %v923
        %v956 = vadd.f32 %v858, %v924
        %v957 = vadd.f32 %v859, %v925
        %v958 = vadd.f32 %v860, %v926
        %v959 = vadd.f32 %v861, %v927
        %v960 = vadd.f32 %v862, %v928
        %v961 = vadd.f32 %v863, %v929
        %v962 = vadd.f32 %v864, %v930
        %v963 = vadd.f32 %v865, %v931
        %v964 = vadd.f32 %v866, %v932
        %v965 = vadd.f32 %v867, %v933
        %v966 = vadd.f32 %v868, %v934
        %v967 = vadd.f32 %v869, %v935
        %v968 = vadd.f32 %v870, %v936
        %v969 = vadd.f32 %v871, %v937
        %v970 = vadd.f32 %v872, %v938
        %v971 = vadd.f32 %v873, %v939
        %v972 = vadd.f32 %v874, %v940
        %v973 = vadd.f32 %v875, %v941
        %v974 = vadd.f32 %v876, %v942
        %v975 = vadd.f32 %v877, %v943
        %v976 = vadd.f32 %v878, %v944
        %v977 = vadd.f32 %v879, %v945
        %v978 = vadd.f32 %v880, %v946
        %v979 = vadd.f32 %v881, %v947
        %v980 = vadd.f32 %v882, %v948
        %v981 = vadd.f32 %v883, %v949
        %v982 = vadd.f32 %v884, %v950
        %v983 = vadd.f32 %v885, %v951
        %v984 = vadd.f32 %v886, %v952
        %v985 = vadd.f32 %v887, %v953
        %v986 = vld [vmem:[%s788 + $0x2] sm:$0xff]
        %v987 = vld [vmem:[%s788 + $0xa] sm:$0xff]
        %v988 = vld [vmem:[%s788 + $0x1a] sm:$0xff]
        %v989 = vld [vmem:[%s788 + $0x22] sm:$0xff]
        %v990 = vld [vmem:[%s788 + $0x32] sm:$0xff]
        %v991 = vld [vmem:[%s788 + $0x3a] sm:$0xff]
        %v992 = vld [vmem:[%s788 + $0x4a] sm:$0xff]
        %v993 = vld [vmem:[%s788 + $0x52] sm:$0xff]
        %v994 = vld [vmem:[%s788 + $0x62] sm:$0xff]
        %v995 = vld [vmem:[%s788 + $0x6a] sm:$0xff]
        %v996 = vld [vmem:[%s788 + $0x7a] sm:$0xff]
        %v997 = vld [vmem:[%s788 + $0x82] sm:$0xff]
        %v998 = vld [vmem:[%s788 + $0x92] sm:$0xff]
        %v999 = vld [vmem:[%s788 + $0x9a] sm:$0xff]
        %v1000 = vld [vmem:[%s788 + $0xaa] sm:$0xff]
        %v1001 = vld [vmem:[%s788 + $0xb2] sm:$0xff]
        %v1002 = vld [vmem:[%s788 + $0xc2] sm:$0xff]
        %v1003 = vld [vmem:[%s788 + $0xca] sm:$0xff]
        %v1004 = vld [vmem:[%s788 + $0xda] sm:$0xff]
        %v1005 = vld [vmem:[%s788 + $0xe2] sm:$0xff]
        %v1006 = vld [vmem:[%s788 + $0xf2] sm:$0xff]
        %v1007 = vld [vmem:[%s788 + $0xfa] sm:$0xff]
        %v1008 = vld [vmem:[%s788 + $0x10a] sm:$0xff]
        %v1009 = vld [vmem:[%s788 + $0x112] sm:$0xff]
        %v1010 = vld [vmem:[%s788 + $0x122] sm:$0xff]
        %v1011 = vld [vmem:[%s788 + $0x12a] sm:$0xff]
        %v1012 = vld [vmem:[%s788 + $0x13a] sm:$0xff]
        %v1013 = vld [vmem:[%s788 + $0x142] sm:$0xff]
        %v1014 = vld [vmem:[%s788 + $0x152] sm:$0xff]
        %v1015 = vld [vmem:[%s788 + $0x15a] sm:$0xff]
        %v1016 = vld [vmem:[%s788 + $0x16a] sm:$0xff]
        %v1017 = vld [vmem:[%s788 + $0x172] sm:$0xff]
        %v1018 = vld [vmem:[%s821 + $0x2] sm:$0x1]
        %v1019 = vperm.slane %v1018, 0
        %v1020 = vmul.f32 %v986, %v1019
        %v1021 = vmul.f32 %v987, %v1019
        %v1022 = vmul.f32 %v988, %v1019
        %v1023 = vmul.f32 %v989, %v1019
        %v1024 = vmul.f32 %v990, %v1019
        %v1025 = vmul.f32 %v991, %v1019
        %v1026 = vmul.f32 %v992, %v1019
        %v1027 = vmul.f32 %v993, %v1019
        %v1028 = vmul.f32 %v994, %v1019
        %v1029 = vmul.f32 %v995, %v1019
        %v1030 = vmul.f32 %v996, %v1019
        %v1031 = vmul.f32 %v997, %v1019
        %v1032 = vmul.f32 %v998, %v1019
        %v1033 = vmul.f32 %v999, %v1019
        %v1034 = vmul.f32 %v1000, %v1019
        %v1035 = vmul.f32 %v1001, %v1019
        %v1036 = vmul.f32 %v1002, %v1019
        %v1037 = vmul.f32 %v1003, %v1019
        %v1038 = vmul.f32 %v1004, %v1019
        %v1039 = vmul.f32 %v1005, %v1019
        %v1040 = vmul.f32 %v1006, %v1019
        %v1041 = vmul.f32 %v1007, %v1019
        %v1042 = vmul.f32 %v1008, %v1019
        %v1043 = vmul.f32 %v1009, %v1019
        %v1044 = vmul.f32 %v1010, %v1019
        %v1045 = vmul.f32 %v1011, %v1019
        %v1046 = vmul.f32 %v1012, %v1019
        %v1047 = vmul.f32 %v1013, %v1019
        %v1048 = vmul.f32 %v1014, %v1019
        %v1049 = vmul.f32 %v1015, %v1019
        %v1050 = vmul.f32 %v1016, %v1019
        %v1051 = vmul.f32 %v1017, %v1019
        %v1052 = vadd.f32 %v954, %v1020
        %v1053 = vadd.f32 %v955, %v1021
        %v1054 = vadd.f32 %v956, %v1022
        %v1055 = vadd.f32 %v957, %v1023
        %v1056 = vadd.f32 %v958, %v1024
        %v1057 = vadd.f32 %v959, %v1025
        %v1058 = vadd.f32 %v960, %v1026
        %v1059 = vadd.f32 %v961, %v1027
        %v1060 = vadd.f32 %v962, %v1028
        %v1061 = vadd.f32 %v963, %v1029
        %v1062 = vadd.f32 %v964, %v1030
        %v1063 = vadd.f32 %v965, %v1031
        %v1064 = vadd.f32 %v966, %v1032
        %v1065 = vadd.f32 %v967, %v1033
        %v1066 = vadd.f32 %v968, %v1034
        %v1067 = vadd.f32 %v969, %v1035
        %v1068 = vadd.f32 %v970, %v1036
        %v1069 = vadd.f32 %v971, %v1037
        %v1070 = vadd.f32 %v972, %v1038
        %v1071 = vadd.f32 %v973, %v1039
        %v1072 = vadd.f32 %v974, %v1040
        %v1073 = vadd.f32 %v975, %v1041
        %v1074 = vadd.f32 %v976, %v1042
        %v1075 = vadd.f32 %v977, %v1043
        %v1076 = vadd.f32 %v978, %v1044
        %v1077 = vadd.f32 %v979, %v1045
        %v1078 = vadd.f32 %v980, %v1046
        %v1079 = vadd.f32 %v981, %v1047
        %v1080 = vadd.f32 %v982, %v1048
        %v1081 = vadd.f32 %v983, %v1049
        %v1082 = vadd.f32 %v984, %v1050
        %v1083 = vadd.f32 %v985, %v1051
        %v1084 = vpack.c.bf16 %v1053, %v1052
        %v1085 = vpack.c.bf16 %v1055, %v1054
        %v1086 = vpack.c.bf16 %v1057, %v1056
        %v1087 = vpack.c.bf16 %v1059, %v1058
        %v1088 = vpack.c.bf16 %v1061, %v1060
        %v1089 = vpack.c.bf16 %v1063, %v1062
        %v1090 = vpack.c.bf16 %v1065, %v1064
        %v1091 = vpack.c.bf16 %v1067, %v1066
        %v1092 = vpack.c.bf16 %v1069, %v1068
        %v1093 = vpack.c.bf16 %v1071, %v1070
        %v1094 = vpack.c.bf16 %v1073, %v1072
        %v1095 = vpack.c.bf16 %v1075, %v1074
        %v1096 = vpack.c.bf16 %v1077, %v1076
        %v1097 = vpack.c.bf16 %v1079, %v1078
        %v1098 = vpack.c.bf16 %v1081, %v1080
        %v1099 = vpack.c.bf16 %v1083, %v1082
        %v1100 = vld [vmem:[%s2] sm:$0xf]
        %v1101 = vld [vmem:[%s2 + $0x4] sm:$0xf]
        %v1102 = vld [vmem:[%s2 + $0x8] sm:$0xf]
        %v1103 = vld [vmem:[%s2 + $0xc] sm:$0xf]
        %v1104 = vld [vmem:[%s2 + $0x10] sm:$0xf]
        %v1105 = vld [vmem:[%s2 + $0x14] sm:$0xf]
        %v1106 = vld [vmem:[%s2 + $0x18] sm:$0xf]
        %v1107 = vld [vmem:[%s2 + $0x1c] sm:$0xf]
        %v1108 = vld [vmem:[%s2 + $0x20] sm:$0xf]
        %v1109 = vld [vmem:[%s2 + $0x24] sm:$0xf]
        %v1110 = vld [vmem:[%s2 + $0x28] sm:$0xf]
        %v1111 = vld [vmem:[%s2 + $0x2c] sm:$0xf]
        %v1112 = vld [vmem:[%s2 + $0x30] sm:$0xf]
        %v1113 = vld [vmem:[%s2 + $0x34] sm:$0xf]
        %v1114 = vld [vmem:[%s2 + $0x38] sm:$0xf]
        %v1115 = vld [vmem:[%s2 + $0x3c] sm:$0xf]
        %v1132 = vunpack.c.l.b16 %v1100
        %v1133 = vunpack.c.l.b16 %v1101
        %v1134 = vunpack.c.l.b16 %v1102
        %v1135 = vunpack.c.l.b16 %v1103
        %v1136 = vunpack.c.l.b16 %v1104
        %v1137 = vunpack.c.l.b16 %v1105
        %v1138 = vunpack.c.l.b16 %v1106
        %v1139 = vunpack.c.l.b16 %v1107
        %v1140 = vunpack.c.l.b16 %v1108
        %v1141 = vunpack.c.l.b16 %v1109
        %v1142 = vunpack.c.l.b16 %v1110
        %v1143 = vunpack.c.l.b16 %v1111
        %v1144 = vunpack.c.l.b16 %v1112
        %v1145 = vunpack.c.l.b16 %v1113
        %v1146 = vunpack.c.l.b16 %v1114
        %v1147 = vunpack.c.l.b16 %v1115
        %v1148 = vpack.c.b16 %v1133, %v1132
        %v1149 = vpack.c.b16 %v1135, %v1134
        %v1150 = vpack.c.b16 %v1137, %v1136
        %v1151 = vpack.c.b16 %v1139, %v1138
        %v1152 = vpack.c.b16 %v1141, %v1140
        %v1153 = vpack.c.b16 %v1143, %v1142
        %v1154 = vpack.c.b16 %v1145, %v1144
        %v1155 = vpack.c.b16 %v1147, %v1146
        %1164 = vmatpush.bf16.msra.mxu0 %v1155
        %1165 = vmatpush.bf16.msra.mxu0 %v1154
        %1166 = vmatpush.bf16.msra.mxu0 %v1153
        %1167 = vmatpush.bf16.msra.mxu0 %v1152
        %1168 = vmatpush.bf16.msra.mxu0 %v1151
        %1169 = vmatpush.bf16.msra.mxu0 %v1150
        %1170 = vmatpush.bf16.msra.mxu0 %v1149
        %1171 = vmatpush.bf16.msra.mxu0 %v1148
        %1172 = vmatmul.bf16.gmra.mxu0 %v1084
        %v1173 = vpop.f32.mrf.mxu0
        %v1174 = vadd.f32 0.0, %v1173
        %v1175 = vpop.f32.mrf.mxu0
        %v1176 = vadd.f32 0.0, %v1175
        %1177 = vmatmul.bf16.gmra.mxu0 %v1085
        %v1178 = vpop.f32.mrf.mxu0
        %v1179 = vadd.f32 0.0, %v1178
        %v1180 = vpop.f32.mrf.mxu0
        %v1181 = vadd.f32 0.0, %v1180
        %1182 = vmatmul.bf16.gmra.mxu0 %v1086
        %v1183 = vpop.f32.mrf.mxu0
        %v1184 = vadd.f32 0.0, %v1183
        %v1185 = vpop.f32.mrf.mxu0
        %v1186 = vadd.f32 0.0, %v1185
        %1187 = vmatmul.bf16.gmra.mxu0 %v1087
        %v1188 = vpop.f32.mrf.mxu0
        %v1189 = vadd.f32 0.0, %v1188
        %v1190 = vpop.f32.mrf.mxu0
        %v1191 = vadd.f32 0.0, %v1190
        %1192 = vmatmul.bf16.gmra.mxu0 %v1088
        %v1193 = vpop.f32.mrf.mxu0
        %v1194 = vadd.f32 0.0, %v1193
        %v1195 = vpop.f32.mrf.mxu0
        %v1196 = vadd.f32 0.0, %v1195
        %1197 = vmatmul.bf16.gmra.mxu0 %v1089
        %v1198 = vpop.f32.mrf.mxu0
        %v1199 = vadd.f32 0.0, %v1198
        %v1200 = vpop.f32.mrf.mxu0
        %v1201 = vadd.f32 0.0, %v1200
        %1202 = vmatmul.bf16.gmra.mxu0 %v1090
        %v1203 = vpop.f32.mrf.mxu0
        %v1204 = vadd.f32 0.0, %v1203
        %v1205 = vpop.f32.mrf.mxu0
        %v1206 = vadd.f32 0.0, %v1205
        %1207 = vmatmul.bf16.gmra.mxu0 %v1091
        %v1208 = vpop.f32.mrf.mxu0
        %v1209 = vadd.f32 0.0, %v1208
        %v1210 = vpop.f32.mrf.mxu0
        %v1211 = vadd.f32 0.0, %v1210
        %1212 = vmatmul.bf16.gmra.mxu0 %v1092
        %v1213 = vpop.f32.mrf.mxu0
        %v1214 = vadd.f32 0.0, %v1213
        %v1215 = vpop.f32.mrf.mxu0
        %v1216 = vadd.f32 0.0, %v1215
        %1217 = vmatmul.bf16.gmra.mxu0 %v1093
        %v1218 = vpop.f32.mrf.mxu0
        %v1219 = vadd.f32 0.0, %v1218
        %v1220 = vpop.f32.mrf.mxu0
        %v1221 = vadd.f32 0.0, %v1220
        %1222 = vmatmul.bf16.gmra.mxu0 %v1094
        %v1223 = vpop.f32.mrf.mxu0
        %v1224 = vadd.f32 0.0, %v1223
        %v1225 = vpop.f32.mrf.mxu0
        %v1226 = vadd.f32 0.0, %v1225
        %1227 = vmatmul.bf16.gmra.mxu0 %v1095
        %v1228 = vpop.f32.mrf.mxu0
        %v1229 = vadd.f32 0.0, %v1228
        %v1230 = vpop.f32.mrf.mxu0
        %v1231 = vadd.f32 0.0, %v1230
        %1232 = vmatmul.bf16.gmra.mxu0 %v1096
        %v1233 = vpop.f32.mrf.mxu0
        %v1234 = vadd.f32 0.0, %v1233
        %v1235 = vpop.f32.mrf.mxu0
        %v1236 = vadd.f32 0.0, %v1235
        %1237 = vmatmul.bf16.gmra.mxu0 %v1097
        %v1238 = vpop.f32.mrf.mxu0
        %v1239 = vadd.f32 0.0, %v1238
        %v1240 = vpop.f32.mrf.mxu0
        %v1241 = vadd.f32 0.0, %v1240
        %1242 = vmatmul.bf16.gmra.mxu0 %v1098
        %v1243 = vpop.f32.mrf.mxu0
        %v1244 = vadd.f32 0.0, %v1243
        %v1245 = vpop.f32.mrf.mxu0
        %v1246 = vadd.f32 0.0, %v1245
        %1247 = vmatmul.bf16.gmra.mxu0 %v1099
        %v1248 = vpop.f32.mrf.mxu0
        %v1249 = vadd.f32 0.0, %v1248
        %v1250 = vpop.f32.mrf.mxu0
        %v1251 = vadd.f32 0.0, %v1250
        %1252 = vdwg.mxu0
        %1253 = vst [vmem:[%s187] sm:$0xff] %v1174
        %1254 = vst [vmem:[%s187 + $0x8] sm:$0xff] %v1176
        %1255 = vst [vmem:[%s187 + $0x10] sm:$0xff] %v1179
        %1256 = vst [vmem:[%s187 + $0x18] sm:$0xff] %v1181
        %1257 = vst [vmem:[%s187 + $0x20] sm:$0xff] %v1184
        %1258 = vst [vmem:[%s187 + $0x28] sm:$0xff] %v1186
        %1259 = vst [vmem:[%s187 + $0x30] sm:$0xff] %v1189
        %1260 = vst [vmem:[%s187 + $0x38] sm:$0xff] %v1191
        %1261 = vst [vmem:[%s187 + $0x40] sm:$0xff] %v1194
        %1262 = vst [vmem:[%s187 + $0x48] sm:$0xff] %v1196
        %1263 = vst [vmem:[%s187 + $0x50] sm:$0xff] %v1199
        %1264 = vst [vmem:[%s187 + $0x58] sm:$0xff] %v1201
        %1265 = vst [vmem:[%s187 + $0x60] sm:$0xff] %v1204
        %1266 = vst [vmem:[%s187 + $0x68] sm:$0xff] %v1206
        %1267 = vst [vmem:[%s187 + $0x70] sm:$0xff] %v1209
        %1268 = vst [vmem:[%s187 + $0x78] sm:$0xff] %v1211
        %1269 = vst [vmem:[%s187 + $0x80] sm:$0xff] %v1214
        %1270 = vst [vmem:[%s187 + $0x88] sm:$0xff] %v1216
        %1271 = vst [vmem:[%s187 + $0x90] sm:$0xff] %v1219
        %1272 = vst [vmem:[%s187 + $0x98] sm:$0xff] %v1221
        %1273 = vst [vmem:[%s187 + $0xa0] sm:$0xff] %v1224
        %1274 = vst [vmem:[%s187 + $0xa8] sm:$0xff] %v1226
        %1275 = vst [vmem:[%s187 + $0xb0] sm:$0xff] %v1229
        %1276 = vst [vmem:[%s187 + $0xb8] sm:$0xff] %v1231
        %1277 = vst [vmem:[%s187 + $0xc0] sm:$0xff] %v1234
        %1278 = vst [vmem:[%s187 + $0xc8] sm:$0xff] %v1236
        %1279 = vst [vmem:[%s187 + $0xd0] sm:$0xff] %v1239
        %1280 = vst [vmem:[%s187 + $0xd8] sm:$0xff] %v1241
        %1281 = vst [vmem:[%s187 + $0xe0] sm:$0xff] %v1244
        %1282 = vst [vmem:[%s187 + $0xe8] sm:$0xff] %v1246
        %1283 = vst [vmem:[%s187 + $0xf0] sm:$0xff] %v1249
        %1284 = vst [vmem:[%s187 + $0xf8] sm:$0xff] %v1251
        %s1285 = sand.u32 %s109, 1
        %s1286 = scalar_lea.sflag [#allocation3], %s1285
        %s1287 = sand.u32 %s109, 1
        %s1288 = smul.addr %s1287, 256
        %s1289 = scalar_lea.vmem [#allocation2], %s1288
        // Predicated region
        $region33: #{tpu_custom_call.1} parent=31 // pred_check
          %p1290 = pneg %p119
        $region34: #{tpu_custom_call.1} parent=31 // pred_check_branch
          %1292 = sbr.rel (%p1290) target = $region36
        $region35: #{tpu_custom_call.1} parent=31 // pred_region
          %s1293 = smul.u32 16, %s22
          %1295 = vsyncadd %s1286, 0
          %s1296 = smul.addr %s1293, 2
          %s1297 = smul.addr %s21, 32
          %s1298 = sadd.s32 %s1296, %s1297
          %s1299 = smul.addr %s1298, 8
          %s1300 = scalar_lea.hbm %s3, %s1299
          %s1301 = sshll.u32 %s1289, 4
          %s1302 = int_to_ptr.vmem [resolvable:$true] %s1301
          %s1303 = sshll.u32 %s1300, 4
          %s1304 = int_to_ptr.hbm [resolvable:$true] %s1303
          %1309 = dma.vmem_to_hbm [thread:$0]  %s1302, 4096, %s1304, %s1286, 128, 128, 8
        $region36: #{tpu_custom_call.1} parent=31 // pred_fallthru
          _
      $region32: #{tpu_custom_call.1} parent=5 // pred_fallthru
        _
      %p1310 = scmp.le.s32.totalorder 2, %s12
      // Predicated region
      $region37: #{tpu_custom_call.1} parent=5 // pred_check
        %p1311 = pneg %p1310
      $region38: #{tpu_custom_call.1} parent=5 // pred_check_branch
        %1313 = sbr.rel (%p1311) target = $region40
      $region39: #{tpu_custom_call.1} parent=5 // pred_region
        %s1314 = ssub.s32 %s12, 2
        // Predicated region
        $region41: #{tpu_custom_call.1} parent=39 // pred_check
          %p1315 = pneg %p125
        $region42: #{tpu_custom_call.1} parent=39 // pred_check_branch
          %1317 = sbr.rel (%p1315) target = $region44
        $region43: #{tpu_custom_call.1} parent=39 // pred_region
          %s1318 = sand.u32 %s110, 1
          %s1319 = scalar_lea.sflag [#allocation3], %s1318
          %s1320 = sand.u32 %s110, 1
          %s1321 = smul.addr %s1320, 256
          %s1322 = scalar_lea.vmem [#allocation2], %s1321
          %1324 = dma.done %s1319, 4096
        $region44: #{tpu_custom_call.1} parent=39 // pred_fallthru
          _
      $region40: #{tpu_custom_call.1} parent=5 // pred_fallthru
        _
    $region6: #{tpu_custom_call.1} parent=1 // loop_footer
      %s16 = sadd.s32 1, %s12
    $region7: #{tpu_custom_call.1} parent=1 // loop_footer_branch
      %11 = sbr.rel target = $region3
    $region8: #{tpu_custom_call.1} parent=1 // loop_exit
      _
    %1325 = vsyncpa [#allocation3], 1
    %s1326 = scalar_lea.sflag [#allocation3], 1
    %1327 = vsyncpa %s1326, 1

</llo_original>
